<compile_context>
chip_gen: v7x
topology: tpu7x:2x2x1
jax: 0.10.0
libtpu: 0.0.40
codegen_flags: <defaults>
</compile_context>

<pallas_src>
import functools

import jax
import jax.numpy as jnp
from jax.experimental import pallas as pl
from jax.experimental.pallas import tpu as pltpu

LANE = 128      # TPU lane width: feature dims padded to this
SUBLANE = 8
MAX_TILE_B = 256


def _round_up(x, m):
    return (x + m - 1) // m * m


def _ds_combine_evidence(e1, e2, classes):
    """Dempster-Shafer combination expressed on evidence (= alpha - 1).

    Padded class lanes carry evidence 0, so they contribute nothing to the sums and
    S = sum(e) + classes is exact over the real classes.
    NOTE: like the PyTorch reference, denom = 1 - C is NOT clamped; maximally
    conflicting opinions could produce inf/NaN (kept for semantic fidelity).
    Divides are EUP approximate reciprocals (separate VLIW slot, ~free).
    """
    k = jnp.float32(classes)
    S1 = jnp.sum(e1, axis=-1, keepdims=True) + k
    S2 = jnp.sum(e2, axis=-1, keepdims=True) + k
    inv_S1 = pl.reciprocal(S1, approx=True)
    inv_S2 = pl.reciprocal(S2, approx=True)
    b1 = e1 * inv_S1
    b2 = e2 * inv_S2
    u1 = k * inv_S1
    u2 = k * inv_S2
    bb_sum = jnp.sum(b1, axis=-1, keepdims=True) * jnp.sum(b2, axis=-1, keepdims=True)
    bb_diag = jnp.sum(b1 * b2, axis=-1, keepdims=True)
    inv_denom = pl.reciprocal(1.0 - (bb_sum - bb_diag), approx=True)
    b_a = (b1 * b2 + b1 * u2 + b2 * u1) * inv_denom
    u_a = (u1 * u2) * inv_denom
    S_a = k * pl.reciprocal(u_a, approx=True)
    return b_a * S_a                      # e_a ;  alpha_a = e_a + 1


# -----------------------------------------------------------------------------
# Fused kernel: classifier -> transferByMatrix -> DS_Combin, all views, one launch
# -----------------------------------------------------------------------------
def _tmnrr_fused_kernel(idx_ref, flag_ref,                        # scalar prefetch (SMEM)
                        x_ref, w1_ref, b1_ref, w2_ref, b2_ref,    # blocked VMEM inputs
                        mat_hbm,                                   # (V, S, ROWS, Cp) HBM
                        ev_ref, tev_ref, eva_ref,                  # outputs
                        mbuf, sem,                                 # scratch
                        *, views, classes, cpad, rows, tile_b):
    base = pl.program_id(0) * tile_b
    train = flag_ref[0] != 0

    def start_gather(v, slot):
        @pl.loop(0, tile_b)
        def _(b):
            s = idx_ref[base + b]
            pltpu.make_async_copy(mat_hbm.at[v, s], mbuf.at[slot, b],
                                  sem.at[slot]).start()

    def wait_gather(slot):
        # One shared DMA semaphore per slot; tile_b equal-sized per-copy waits drain
        # it exactly.  Dummy (0, 0) source keeps the descriptor shape without
        # re-reading idx_ref between waits (avoids SMEM sst->sld forwarding stalls).
        @pl.loop(0, tile_b)
        def _(b):
            pltpu.make_async_copy(mat_hbm.at[0, 0], mbuf.at[slot, b],
                                  sem.at[slot]).wait()

    # Prime view-0's transfer-matrix gather (training only); the DMAs overlap with
    # the packed classifier matmuls below.
    @pl.when(train)
    def _():
        start_gather(0, 0)

    # ---- Packed classifier, all views at once (block-diagonal weights):
    #      Linear -> ReLU -> Linear -> Softplus.  bf16 MXU operands, f32 acc/epilogue.
    x = x_ref[...]                                                 # (tile_b, V*dpad) bf16
    h = jnp.dot(x, w1_ref[...], preferred_element_type=jnp.float32) + b1_ref[...]
    h = jnp.maximum(h, 0.0)
    z = jnp.dot(h.astype(jnp.bfloat16), w2_ref[...],
                preferred_element_type=jnp.float32) + b2_ref[...]
    # Softplus with PyTorch semantics (beta=1, threshold=20).
    ev = jnp.where(z > 20.0, z, jnp.log1p(jnp.exp(jnp.minimum(z, 20.0))))
    lane = jax.lax.broadcasted_iota(jnp.int32, ev.shape, 1)
    ev = jnp.where((lane % cpad) < classes, ev, 0.0)               # zero padded lanes
    ev_ref[...] = ev

    # ---- Per-view noise transfer (training only) + Dempster-Shafer chain.
    e_comb = None
    for v in range(views):                                         # static unroll
        slot = v & 1
        ev_v = ev[:, v * cpad:(v + 1) * cpad]

        @pl.when(train)
        def _(ev_v=ev_v, v=v, slot=slot):
            # Issue next view's gather first so it overlaps this view's
            # contraction + DS-combine epilogue (double-buffered mbuf).
            if v + 1 < views:
                start_gather(v + 1, 1 - slot)
            wait_gather(slot)
            m = mbuf[slot]                                         # (tile_b, rows, cpad)
            # out[b, j] = sum_{r<rows} ev[b, r] * M[idx[b], r, j]   (rows = 8 here)
            t_mm = jnp.sum(ev_v[:, :rows, None] * m, axis=1)
            tev_ref[:, v * cpad:(v + 1) * cpad] = t_mm

        @pl.when(jnp.logical_not(train))
        def _(ev_v=ev_v, v=v):
            # eval: identity transfer (reference semantics), no DMAs at all.
            tev_ref[:, v * cpad:(v + 1) * cpad] = ev_v

        tev_v = tev_ref[:, v * cpad:(v + 1) * cpad]
        e_comb = tev_v if v == 0 else _ds_combine_evidence(e_comb, tev_v, classes)

    eva_ref[...] = e_comb                                          # evidence_a = alpha_a - 1


def tmnrr_fused_forward(x_packed, w1, b1, w2, b2, mats, indexes, train_flag,
                        *, views, classes, cpad, rows, tile_b):
    bp, vd = x_packed.shape
    vh = w1.shape[1]
    vc = w2.shape[1]
    grid = (bp // tile_b,)

    kern = functools.partial(_tmnrr_fused_kernel, views=views, classes=classes,
                             cpad=cpad, rows=rows, tile_b=tile_b)

    return pl.pallas_call(
        kern,
        out_shape=(
            jax.ShapeDtypeStruct((bp, vc), jnp.float32),    # evidence (packed views)
            jax.ShapeDtypeStruct((bp, vc), jnp.float32),    # transferred evidence
            jax.ShapeDtypeStruct((bp, cpad), jnp.float32),  # combined evidence_a
        ),
        grid_spec=pltpu.PrefetchScalarGridSpec(
            num_scalar_prefetch=2,                           # indexes, train flag
            grid=grid,
            in_specs=[
                pl.BlockSpec((tile_b, vd), lambda i, idx, flg: (i, 0)),
                pl.BlockSpec((vd, vh),     lambda i, idx, flg: (0, 0)),
                pl.BlockSpec((1, vh),      lambda i, idx, flg: (0, 0)),
                pl.BlockSpec((vh, vc),     lambda i, idx, flg: (0, 0)),
                pl.BlockSpec((1, vc),      lambda i, idx, flg: (0, 0)),
                pl.BlockSpec(memory_space=pl.ANY),   # transfer matrices stay in HBM
            ],
            out_specs=[
                pl.BlockSpec((tile_b, vc),   lambda i, idx, flg: (i, 0)),
                pl.BlockSpec((tile_b, vc),   lambda i, idx, flg: (i, 0)),
                pl.BlockSpec((tile_b, cpad), lambda i, idx, flg: (i, 0)),
            ],
            scratch_shapes=[
                pltpu.VMEM((2, tile_b, rows, cpad), jnp.float32),  # double-buffered gather
                pltpu.SemaphoreType.DMA((2,)),                     # one sem per slot
            ],
        ),
        compiler_params=pltpu.CompilerParams(
            dimension_semantics=("parallel",),    # batch tiles independent (v7x dual-TC)
        ),
    )(indexes, train_flag, x_packed, w1, b1, w2, b2, mats)


# -----------------------------------------------------------------------------
# TMNRR model (JAX / Pallas)
# -----------------------------------------------------------------------------
class TMNRRPallas:
    def __init__(self, classes, views, classifier_dims, sample_num, key):
        self.classes = classes
        self.views = views
        self.sample_num = sample_num
        self.training = True

        # TODO(synk): only the 2-entry classifier_dims case ([in, hidden] + classes head,
        # matching the reference config) is implemented; deeper MLPs are not supported.
        for v in range(views):
            assert len(classifier_dims[v]) == 2

        self.in_dims = [classifier_dims[v][0] for v in range(views)]
        self.hid_dims = [classifier_dims[v][1] for v in range(views)]
        self.dpad = _round_up(max(self.in_dims), LANE)
        self.hpad = _round_up(max(self.hid_dims), LANE)
        self.cpad = _round_up(classes, LANE)
        self.rows = _round_up(classes, SUBLANE)   # real transfer-matrix rows gathered

        # Per-view raw params (PyTorch nn.Linear default init); kept for ref checks.
        w1_raw, b1_raw, w2_raw, b2_raw = [], [], [], []
        for v in range(views):
            d0, d1 = self.in_dims[v], self.hid_dims[v]
            key, k1, k2, k3, k4 = jax.random.split(key, 5)
            lim1 = 1.0 / float(d0) ** 0.5
            lim2 = 1.0 / float(d1) ** 0.5
            w1_raw.append(jax.random.uniform(k1, (d0, d1), jnp.float32, -lim1, lim1))
            b1_raw.append(jax.random.uniform(k2, (d1,), jnp.float32, -lim1, lim1))
            w2_raw.append(jax.random.uniform(k3, (d1, classes), jnp.float32, -lim2, lim2))
            b2_raw.append(jax.random.uniform(k4, (classes,), jnp.float32, -lim2, lim2))
        self.w1_raw, self.b1_raw = w1_raw, b1_raw
        self.w2_raw, self.b2_raw = w2_raw, b2_raw

        # Block-diagonal packed weights: one MXU matmul per layer covers ALL views
        # (256-wide operands fill the v6e/v7x MXU; harmless at these sizes on v5e).
        vd, vh, vc = views * self.dpad, views * self.hpad, views * self.cpad
        w1 = jnp.zeros((vd, vh), jnp.float32)
        b1 = jnp.zeros((1, vh), jnp.float32)
        w2 = jnp.zeros((vh, vc), jnp.float32)
        b2 = jnp.zeros((1, vc), jnp.float32)
        for v in range(views):
            d0, d1 = self.in_dims[v], self.hid_dims[v]
            w1 = w1.at[v * self.dpad:v * self.dpad + d0,
                       v * self.hpad:v * self.hpad + d1].set(w1_raw[v])
            b1 = b1.at[0, v * self.hpad:v * self.hpad + d1].set(b1_raw[v])
            w2 = w2.at[v * self.hpad:v * self.hpad + d1,
                       v * self.cpad:v * self.cpad + classes].set(w2_raw[v])
            b2 = b2.at[0, v * self.cpad:v * self.cpad + classes].set(b2_raw[v])
        self.w1 = w1.astype(jnp.bfloat16)
        self.b1 = b1
        self.w2 = w2.astype(jnp.bfloat16)
        self.b2 = b2

        # matrixes = eye(classes), stored with only the `rows` real contraction rows
        # (zero-padded to lane width): (V, S, rows, cpad) -> 16x fewer gather bytes
        # per sample than a full (cpad, cpad) tile.
        eye = jnp.zeros((self.rows, self.cpad), jnp.float32).at[
            jnp.arange(classes), jnp.arange(classes)].set(1.0)
        self.matrixes = jnp.tile(eye[None, None], (views, sample_num, 1, 1))

    def forward(self, X, y, indexes, global_step):
        views, classes = self.views, self.classes
        dpad, cpad = self.dpad, self.cpad
        batch = X[0].shape[0]

        # Batch tiling: multiples of 8 sublanes; prefer >= 2 grid steps so the
        # "parallel" axis feeds both v7x TensorCores and the pipeline has >= 2 stages.
        bmin = _round_up(batch, SUBLANE)
        if bmin <= SUBLANE:
            tile_b = bmin
        else:
            tile_b = min(MAX_TILE_B, _round_up((bmin + 1) // 2, SUBLANE))
        bp = _round_up(bmin, tile_b)

        # Lane-dense packed bf16 input (halves x HBM bytes; kernel feeds bf16 MXU anyway).
        x_packed = jnp.zeros((bp, views * dpad), jnp.bfloat16)
        for v in range(views):
            x_packed = x_packed.at[:batch, v * dpad:v * dpad + self.in_dims[v]].set(
                X[v].astype(jnp.bfloat16))

        # Clamp indexes so the in-kernel gather can never DMA out of range.
        idx = jnp.zeros((bp,), jnp.int32).at[:batch].set(
            jnp.clip(indexes.astype(jnp.int32), 0, self.sample_num - 1))
        flag = jnp.array([1 if self.training else 0], jnp.int32)

        ev_p, tev_p, eva_p = tmnrr_fused_forward(
            x_packed, self.w1, self.b1, self.w2, self.b2, self.matrixes,
            idx, flag, views=views, classes=classes, cpad=cpad,
            rows=self.rows, tile_b=tile_b)

        evidence = {v: ev_p[:batch, v * cpad:v * cpad + classes] for v in range(views)}
        transferred_evidence = {v: tev_p[:batch, v * cpad:v * cpad + classes]
                                for v in range(views)}
        evidence_a = eva_p[:batch, :classes]

        # different_num: kept as a device scalar (no per-view host syncs).
        diff = jnp.zeros((), jnp.float32)
        for v in range(views):
            diff = diff + jnp.sum(
                (jnp.argmax(transferred_evidence[v], axis=1)
                 != jnp.argmax(evidence[v], axis=1)).astype(jnp.float32))

        # TODO(synk): ce_loss / conf_loss / similarity_loss / consistent_view_loss /
        # corrected_loss are undefined in the reference source; loss stays 0.
        loss = jnp.float32(0.0)

        return transferred_evidence, evidence_a, loss, evidence, diff / views


# -----------------------------------------------------------------------------
if __name__ == "__main__":
    classes = 8
    views = 2
    sample_num = 16
    batch = 8
    classifier_dims = [[32, 64], [48, 64]]

    key = jax.random.PRNGKey(0)
    key, kx0, kx1, ky, kidx, kmodel = jax.random.split(key, 6)

    X = [
        jax.random.normal(kx0, (batch, classifier_dims[0][0]), jnp.float32),
        jax.random.normal(kx1, (batch, classifier_dims[1][0]), jnp.float32),
    ]
    labels = jax.random.randint(ky, (batch,), 0, classes)
    y = jax.nn.one_hot(labels, classes, dtype=jnp.float32)
    indexes = jax.random.permutation(kidx, sample_num)[:batch]

    model = TMNRRPallas(classes, views, classifier_dims, sample_num, kmodel)

    # ---- training-mode forward (exercises the in-kernel gather + transfer path) ----
    transferred_evidence, evidence_a, loss, evidence, diff = model.forward(
        X, y, indexes, global_step=1)
    jax.block_until_ready((transferred_evidence, evidence_a, loss, evidence, diff))

    assert evidence_a.shape == (batch, classes)
    for v in range(views):
        assert evidence[v].shape == (batch, classes)
        assert bool(jnp.all(jnp.isfinite(evidence[v])))
        assert bool(jnp.all(evidence[v] > 0.0))          # softplus output is positive
    assert bool(jnp.all(jnp.isfinite(evidence_a)))
    assert bool(jnp.all(evidence_a >= -1e-2))

    # Classifier MLP vs pure-JAX reference on the same bf16-rounded operands.
    for v in range(views):
        xr = X[v].astype(jnp.bfloat16).astype(jnp.float32)
        w1r = model.w1_raw[v].astype(jnp.bfloat16).astype(jnp.float32)
        b1r = model.b1_raw[v]
        w2r = model.w2_raw[v].astype(jnp.bfloat16).astype(jnp.float32)
        b2r = model.b2_raw[v]
        h = jnp.maximum(xr @ w1r + b1r, 0.0)
        z = h.astype(jnp.bfloat16).astype(jnp.float32) @ w2r + b2r
        ref = jnp.where(z > 20.0, z, jnp.log1p(jnp.exp(jnp.minimum(z, 20.0))))
        assert bool(jnp.allclose(evidence[v], ref, atol=5e-2, rtol=5e-2))

    # With identity transfer matrices, transferred evidence == evidence exactly.
    for v in range(views):
        assert bool(jnp.allclose(transferred_evidence[v], evidence[v],
                                 atol=1e-5, rtol=1e-5))
    assert float(diff) == 0.0

    # Dempster-Shafer combination vs pure-JAX reference (kernel uses approx recip).
    def ds_two(e1, e2):
        S1 = jnp.sum(e1 + 1.0, axis=1, keepdims=True)
        S2 = jnp.sum(e2 + 1.0, axis=1, keepdims=True)
        b1_ = e1 / S1
        b2_ = e2 / S2
        u1 = classes / S1
        u2 = classes / S2
        Cc = (jnp.sum(b1_, 1, keepdims=True) * jnp.sum(b2_, 1, keepdims=True)
              - jnp.sum(b1_ * b2_, 1, keepdims=True))
        b_a = (b1_ * b2_ + b1_ * u2 + b2_ * u1) / (1.0 - Cc)
        u_a = u1 * u2 / (1.0 - Cc)
        return b_a * (classes / u_a)                      # combined evidence

    e_ref = transferred_evidence[0]
    for v in range(1, views):
        e_ref = ds_two(e_ref, transferred_evidence[v])
    assert bool(jnp.allclose(evidence_a, e_ref, atol=2e-2, rtol=2e-2))

    # ---- eval-mode forward (pl.when skips all gather DMAs / contraction) -----------
    model.training = False
    tev_e, eva_e, _, ev_e, diff_e = model.forward(X, y, indexes, global_step=1)
    jax.block_until_ready((tev_e, eva_e, ev_e, diff_e))
    for v in range(views):
        assert bool(jnp.allclose(tev_e[v], ev_e[v], atol=1e-5, rtol=1e-5))
        assert bool(jnp.allclose(ev_e[v], evidence[v], atol=1e-4, rtol=1e-4))
    assert bool(jnp.all(jnp.isfinite(eva_e)))
    assert float(diff_e) == 0.0

    print("KERNEL_OK")
</pallas_src>

<mosaic_0001>
module attributes {stable_mosaic.version = 11 : i64} {
  func.func @_tmnrr_fused_kernel(%arg0: i32, %arg1: memref<8xi32, #tpu.memory_space<smem>>, %arg2: memref<1xi32, #tpu.memory_space<smem>>, %arg3: memref<8x256xbf16, #tpu.memory_space<vmem>>, %arg4: memref<256x256xbf16, #tpu.memory_space<vmem>>, %arg5: memref<1x256xf32, #tpu.memory_space<vmem>>, %arg6: memref<256x256xbf16, #tpu.memory_space<vmem>>, %arg7: memref<1x256xf32, #tpu.memory_space<vmem>>, %arg8: memref<2x16x8x128xf32, #tpu.memory_space<any>>, %arg9: memref<8x256xf32, #tpu.memory_space<vmem>>, %arg10: memref<8x256xf32, #tpu.memory_space<vmem>>, %arg11: memref<8x128xf32, #tpu.memory_space<vmem>>, %arg12: memref<2x8x8x128xf32, #tpu.memory_space<vmem>>, %arg13: memref<2x!tpu.dma_semaphore, #tpu.memory_space<semaphore_mem>>) attributes {dimension_semantics = [#tpu.dimension_semantics<parallel>], iteration_bounds = array<i64: 1>, scalar_prefetch = 2 : i64, scratch_operands = 2 : i64, tpu.core_type = #tpu.core_type<tc>, window_params = [{transform_indices = @transform_0, window_bounds = array<i64: 8, 256>}, {pipeline_mode = #tpu.pipeline_mode<synchronous>, transform_indices = @transform_1, window_bounds = array<i64: 256, 256>}, {pipeline_mode = #tpu.pipeline_mode<synchronous>, transform_indices = @transform_2, window_bounds = array<i64: 1, 256>}, {pipeline_mode = #tpu.pipeline_mode<synchronous>, transform_indices = @transform_3, window_bounds = array<i64: 256, 256>}, {pipeline_mode = #tpu.pipeline_mode<synchronous>, transform_indices = @transform_4, window_bounds = array<i64: 1, 256>}, {}, {transform_indices = @transform_6, window_bounds = array<i64: 8, 256>}, {transform_indices = @transform_7, window_bounds = array<i64: 8, 256>}, {transform_indices = @transform_8, window_bounds = array<i64: 8, 128>}]} {
    %c8_i32 = arith.constant 8 : i32
    %0 = arith.muli %arg0, %c8_i32 : i32
    %c0 = arith.constant 0 : index
    %1 = memref.load %arg2[%c0] : memref<1xi32, #tpu.memory_space<smem>>
    %c0_i32 = arith.constant 0 : i32
    %2 = arith.cmpi ne, %1, %c0_i32 : i32
    %3 = arith.extui %2 : i1 to i32
    %c0_i32_0 = arith.constant 0 : i32
    %4 = arith.cmpi ne, %3, %c0_i32_0 : i32
    scf.if %4 {
      %c0_i32_44 = arith.constant 0 : i32
      %c8_i32_45 = arith.constant 8 : i32
      %109 = arith.addi %c0_i32_44, %c8_i32_45 : i32
      %c1_i32_46 = arith.constant 1 : i32
      scf.for %arg14 = %c0_i32_44 to %109 step %c1_i32_46  : i32 {
        %c1_i32_48 = arith.constant 1 : i32
        %110 = arith.muli %arg14, %c1_i32_48 : i32
        %c0_i32_49 = arith.constant 0 : i32
        %111 = arith.addi %c0_i32_49, %110 : i32
        %112 = arith.addi %0, %111 : i32
        %113 = arith.index_cast %112 : i32 to index
        %114 = memref.load %arg1[%113] : memref<8xi32, #tpu.memory_space<smem>>
        %c0_i32_50 = arith.constant 0 : i32
        %c0_i32_51 = arith.constant 0 : i32
        %c0_i32_52 = arith.constant 0 : i32
        %c0_i32_53 = arith.constant 0 : i32
        %c0_i32_54 = arith.constant 0 : i32
        %115 = tpu.memref_slice %arg8[%c0_i32_50, %114, %c0_i32_53, %c0_i32_54] : memref<2x16x8x128xf32, #tpu.memory_space<any>> -> memref<1x1x8x128xf32, #tpu.memory_space<any>>
        %116 = tpu.memref_squeeze %115 : memref<1x1x8x128xf32, #tpu.memory_space<any>> -> memref<8x128xf32, #tpu.memory_space<any>>
        %c0_i32_55 = arith.constant 0 : i32
        %c0_i32_56 = arith.constant 0 : i32
        %117 = tpu.memref_slice %arg12[%c0_i32_51, %111, %c0_i32_55, %c0_i32_56] : memref<2x8x8x128xf32, #tpu.memory_space<vmem>> -> memref<1x1x8x128xf32, #tpu.memory_space<vmem>>
        %118 = tpu.memref_squeeze %117 : memref<1x1x8x128xf32, #tpu.memory_space<vmem>> -> memref<8x128xf32, #tpu.memory_space<vmem>>
        %119 = tpu.memref_slice %arg13[%c0_i32_52] : memref<2x!tpu.dma_semaphore, #tpu.memory_space<semaphore_mem>> -> memref<1x!tpu.dma_semaphore, #tpu.memory_space<semaphore_mem>>
        %120 = tpu.memref_squeeze %119 : memref<1x!tpu.dma_semaphore, #tpu.memory_space<semaphore_mem>> -> memref<!tpu.dma_semaphore, #tpu.memory_space<semaphore_mem>>
        tpu.enqueue_dma source(%116 : memref<8x128xf32, #tpu.memory_space<any>>) target(%118 : memref<8x128xf32, #tpu.memory_space<vmem>>) target_semaphore(%120 : memref<!tpu.dma_semaphore, #tpu.memory_space<semaphore_mem>>)
      }
      %c8_i32_47 = arith.constant 8 : i32
    } else {
    }
    %c0_1 = arith.constant 0 : index
    %c0_2 = arith.constant 0 : index
    %5 = vector.load %arg3[%c0_1, %c0_2] : memref<8x256xbf16, #tpu.memory_space<vmem>>, vector<8x256xbf16>
    %c0_3 = arith.constant 0 : index
    %c0_4 = arith.constant 0 : index
    %6 = vector.load %arg4[%c0_3, %c0_4] : memref<256x256xbf16, #tpu.memory_space<vmem>>, vector<256x256xbf16>
    %cst = arith.constant dense<0.000000e+00> : vector<8x256xf32>
    %7 = tpu.matmul %5, %6, %cst {dimension_numbers = #tpu.dot_dimension_numbers<[1], [0], [0], [1], [0, 0, 1, 1], [], []>} : vector<8x256xbf16>, vector<256x256xbf16>, vector<8x256xf32> -> vector<8x256xf32>
    %c0_5 = arith.constant 0 : index
    %c0_6 = arith.constant 0 : index
    %8 = vector.load %arg5[%c0_5, %c0_6] : memref<1x256xf32, #tpu.memory_space<vmem>>, vector<1x256xf32>
    %9 = vector.broadcast %8 : vector<1x256xf32> to vector<8x256xf32>
    %10 = arith.addf %7, %9 : vector<8x256xf32>
    %cst_7 = arith.constant 0.000000e+00 : f32
    %11 = vector.broadcast %cst_7 : f32 to vector<8x256xf32>
    %12 = arith.maximumf %10, %11 : vector<8x256xf32>
    %13 = arith.truncf %12 : vector<8x256xf32> to vector<8x256xbf16>
    %c0_8 = arith.constant 0 : index
    %c0_9 = arith.constant 0 : index
    %14 = vector.load %arg6[%c0_8, %c0_9] : memref<256x256xbf16, #tpu.memory_space<vmem>>, vector<256x256xbf16>
    %cst_10 = arith.constant dense<0.000000e+00> : vector<8x256xf32>
    %15 = tpu.matmul %13, %14, %cst_10 {dimension_numbers = #tpu.dot_dimension_numbers<[1], [0], [0], [1], [0, 0, 1, 1], [], []>} : vector<8x256xbf16>, vector<256x256xbf16>, vector<8x256xf32> -> vector<8x256xf32>
    %c0_11 = arith.constant 0 : index
    %c0_12 = arith.constant 0 : index
    %16 = vector.load %arg7[%c0_11, %c0_12] : memref<1x256xf32, #tpu.memory_space<vmem>>, vector<1x256xf32>
    %17 = vector.broadcast %16 : vector<1x256xf32> to vector<8x256xf32>
    %18 = arith.addf %15, %17 : vector<8x256xf32>
    %cst_13 = arith.constant 2.000000e+01 : f32
    %19 = vector.broadcast %cst_13 : f32 to vector<8x256xf32>
    %20 = arith.cmpf ogt, %18, %19 : vector<8x256xf32>
    %cst_14 = arith.constant 2.000000e+01 : f32
    %21 = vector.broadcast %cst_14 : f32 to vector<8x256xf32>
    %22 = arith.minimumf %18, %21 : vector<8x256xf32>
    %23 = math.exp %22 : vector<8x256xf32>
    %24 = math.log1p %23 : vector<8x256xf32>
    %25 = arith.select %20, %18, %24 : vector<8x256xi1>, vector<8x256xf32>
    %26 = tpu.iota {dimensions = array<i32: 1>} : vector<8x256xi32>
    %c128_i32 = arith.constant 128 : i32
    %c0_i32_15 = arith.constant 0 : i32
    %27 = arith.cmpi eq, %c128_i32, %c0_i32_15 : i32
    %c1_i32 = arith.constant 1 : i32
    %28 = arith.select %27, %c1_i32, %c128_i32 : i32
    %29 = vector.broadcast %28 : i32 to vector<8x256xi32>
    %30 = arith.remsi %26, %29 : vector<8x256xi32>
    %c0_i32_16 = arith.constant 0 : i32
    %31 = vector.broadcast %c0_i32_16 : i32 to vector<8x256xi32>
    %32 = arith.cmpi ne, %30, %31 : vector<8x256xi32>
    %c0_i32_17 = arith.constant 0 : i32
    %33 = vector.broadcast %c0_i32_17 : i32 to vector<8x256xi32>
    %34 = arith.cmpi slt, %30, %33 : vector<8x256xi32>
    %c0_i32_18 = arith.constant 0 : i32
    %35 = arith.cmpi slt, %28, %c0_i32_18 : i32
    %36 = vector.broadcast %35 : i1 to vector<8x256xi1>
    %37 = vector.broadcast %36 : vector<8x256xi1> to vector<8x256xi1>
    %38 = arith.xori %34, %37 : vector<8x256xi1>
    %39 = arith.andi %38, %32 : vector<8x256xi1>
    %40 = vector.broadcast %28 : i32 to vector<8x256xi32>
    %41 = arith.addi %30, %40 : vector<8x256xi32>
    %42 = arith.select %39, %41, %30 : vector<8x256xi1>, vector<8x256xi32>
    %c8_i32_19 = arith.constant 8 : i32
    %43 = vector.broadcast %c8_i32_19 : i32 to vector<8x256xi32>
    %44 = arith.cmpi slt, %42, %43 : vector<8x256xi32>
    %cst_20 = arith.constant 0.000000e+00 : f32
    %45 = vector.broadcast %cst_20 : f32 to vector<8x256xf32>
    %46 = arith.select %44, %25, %45 : vector<8x256xi1>, vector<8x256xf32>
    %c0_21 = arith.constant 0 : index
    %c0_22 = arith.constant 0 : index
    %47 = vector.load %arg9[%c0_21, %c0_22] : memref<8x256xf32, #tpu.memory_space<vmem>>, vector<8x256xf32>
    tpu.vector_store %arg9[%c0_21, %c0_22], %46 {strides = array<i32>} : memref<8x256xf32, #tpu.memory_space<vmem>>, vector<8x256xf32>,
    %48 = vector.extract_strided_slice %46 {offsets = [0, 0], sizes = [8, 128], strides = [1, 1]} : vector<8x256xf32> to vector<8x128xf32>
    %49 = arith.extui %2 : i1 to i32
    %c0_i32_23 = arith.constant 0 : i32
    %50 = arith.cmpi ne, %49, %c0_i32_23 : i32
    scf.if %50 {
      %c0_i32_44 = arith.constant 0 : i32
      %c8_i32_45 = arith.constant 8 : i32
      %109 = arith.addi %c0_i32_44, %c8_i32_45 : i32
      %c1_i32_46 = arith.constant 1 : i32
      scf.for %arg14 = %c0_i32_44 to %109 step %c1_i32_46  : i32 {
        %c1_i32_59 = arith.constant 1 : i32
        %119 = arith.muli %arg14, %c1_i32_59 : i32
        %c0_i32_60 = arith.constant 0 : i32
        %120 = arith.addi %c0_i32_60, %119 : i32
        %121 = arith.addi %0, %120 : i32
        %122 = arith.index_cast %121 : i32 to index
        %123 = memref.load %arg1[%122] : memref<8xi32, #tpu.memory_space<smem>>
        %c1_i32_61 = arith.constant 1 : i32
        %c1_i32_62 = arith.constant 1 : i32
        %c1_i32_63 = arith.constant 1 : i32
        %c0_i32_64 = arith.constant 0 : i32
        %c0_i32_65 = arith.constant 0 : i32
        %124 = tpu.memref_slice %arg8[%c1_i32_61, %123, %c0_i32_64, %c0_i32_65] : memref<2x16x8x128xf32, #tpu.memory_space<any>> -> memref<1x1x8x128xf32, #tpu.memory_space<any>>
        %125 = tpu.memref_squeeze %124 : memref<1x1x8x128xf32, #tpu.memory_space<any>> -> memref<8x128xf32, #tpu.memory_space<any>>
        %c0_i32_66 = arith.constant 0 : i32
        %c0_i32_67 = arith.constant 0 : i32
        %126 = tpu.memref_slice %arg12[%c1_i32_62, %120, %c0_i32_66, %c0_i32_67] : memref<2x8x8x128xf32, #tpu.memory_space<vmem>> -> memref<1x1x8x128xf32, #tpu.memory_space<vmem>>
        %127 = tpu.memref_squeeze %126 : memref<1x1x8x128xf32, #tpu.memory_space<vmem>> -> memref<8x128xf32, #tpu.memory_space<vmem>>
        %128 = tpu.memref_slice %arg13[%c1_i32_63] : memref<2x!tpu.dma_semaphore, #tpu.memory_space<semaphore_mem>> -> memref<1x!tpu.dma_semaphore, #tpu.memory_space<semaphore_mem>>
        %129 = tpu.memref_squeeze %128 : memref<1x!tpu.dma_semaphore, #tpu.memory_space<semaphore_mem>> -> memref<!tpu.dma_semaphore, #tpu.memory_space<semaphore_mem>>
        tpu.enqueue_dma source(%125 : memref<8x128xf32, #tpu.memory_space<any>>) target(%127 : memref<8x128xf32, #tpu.memory_space<vmem>>) target_semaphore(%129 : memref<!tpu.dma_semaphore, #tpu.memory_space<semaphore_mem>>)
      }
      %c8_i32_47 = arith.constant 8 : i32
      %c0_i32_48 = arith.constant 0 : i32
      %c8_i32_49 = arith.constant 8 : i32
      %110 = arith.addi %c0_i32_48, %c8_i32_49 : i32
      %c1_i32_50 = arith.constant 1 : i32
      scf.for %arg14 = %c0_i32_48 to %110 step %c1_i32_50  : i32 {
        %c1_i32_59 = arith.constant 1 : i32
        %119 = arith.muli %arg14, %c1_i32_59 : i32
        %c0_i32_60 = arith.constant 0 : i32
        %120 = arith.addi %c0_i32_60, %119 : i32
        %c0_i32_61 = arith.constant 0 : i32
        %c0_i32_62 = arith.constant 0 : i32
        %c0_i32_63 = arith.constant 0 : i32
        %c0_i32_64 = arith.constant 0 : i32
        %c0_i32_65 = arith.constant 0 : i32
        %c0_i32_66 = arith.constant 0 : i32
        %121 = tpu.memref_slice %arg8[%c0_i32_61, %c0_i32_62, %c0_i32_65, %c0_i32_66] : memref<2x16x8x128xf32, #tpu.memory_space<any>> -> memref<1x1x8x128xf32, #tpu.memory_space<any>>
        %122 = tpu.memref_squeeze %121 : memref<1x1x8x128xf32, #tpu.memory_space<any>> -> memref<8x128xf32, #tpu.memory_space<any>>
        %c0_i32_67 = arith.constant 0 : i32
        %c0_i32_68 = arith.constant 0 : i32
        %123 = tpu.memref_slice %arg12[%c0_i32_63, %120, %c0_i32_67, %c0_i32_68] : memref<2x8x8x128xf32, #tpu.memory_space<vmem>> -> memref<1x1x8x128xf32, #tpu.memory_space<vmem>>
        %124 = tpu.memref_squeeze %123 : memref<1x1x8x128xf32, #tpu.memory_space<vmem>> -> memref<8x128xf32, #tpu.memory_space<vmem>>
        %125 = tpu.memref_slice %arg13[%c0_i32_64] : memref<2x!tpu.dma_semaphore, #tpu.memory_space<semaphore_mem>> -> memref<1x!tpu.dma_semaphore, #tpu.memory_space<semaphore_mem>>
        %126 = tpu.memref_squeeze %125 : memref<1x!tpu.dma_semaphore, #tpu.memory_space<semaphore_mem>> -> memref<!tpu.dma_semaphore, #tpu.memory_space<semaphore_mem>>
        tpu.wait_dma2 semaphore(%126 : memref<!tpu.dma_semaphore, #tpu.memory_space<semaphore_mem>>) src(%122 : memref<8x128xf32, #tpu.memory_space<any>>) dst(%124 : memref<8x128xf32, #tpu.memory_space<vmem>>)
      }
      %c8_i32_51 = arith.constant 8 : i32
      %c0_52 = arith.constant 0 : index
      %c0_53 = arith.constant 0 : index
      %c0_54 = arith.constant 0 : index
      %c0_55 = arith.constant 0 : index
      %111 = vector.load %arg12[%c0_52, %c0_53, %c0_54, %c0_55] : memref<2x8x8x128xf32, #tpu.memory_space<vmem>>, vector<1x8x8x128xf32>
      %112 = vector.shape_cast %111 : vector<1x8x8x128xf32> to vector<8x8x128xf32>
      %113 = vector.extract_strided_slice %48 {offsets = [0, 0], sizes = [8, 8], strides = [1, 1]} : vector<8x128xf32> to vector<8x8xf32>
      %114 = vector.shape_cast %113 : vector<8x8xf32> to vector<8x8x1xf32>
      %115 = vector.broadcast %114 : vector<8x8x1xf32> to vector<8x8x128xf32>
      %116 = arith.mulf %115, %112 : vector<8x8x128xf32>
      %cst_56 = arith.constant dense<0.000000e+00> : vector<8x128xf32>
      %117 = vector.multi_reduction <add>, %116, %cst_56 [1] : vector<8x8x128xf32> to vector<8x128xf32>
      %c0_57 = arith.constant 0 : index
      %c0_58 = arith.constant 0 : index
      %118 = vector.load %arg10[%c0_57, %c0_58] : memref<8x256xf32, #tpu.memory_space<vmem>>, vector<8x128xf32>
      tpu.vector_store %arg10[%c0_57, %c0_58], %117 {strides = array<i32>} : memref<8x256xf32, #tpu.memory_space<vmem>>, vector<8x128xf32>,
    } else {
    }
    %true = arith.constant true
    %51 = arith.xori %2, %true : i1
    %52 = arith.extui %51 : i1 to i32
    %c0_i32_24 = arith.constant 0 : i32
    %53 = arith.cmpi ne, %52, %c0_i32_24 : i32
    scf.if %53 {
      %c0_44 = arith.constant 0 : index
      %c0_45 = arith.constant 0 : index
      %109 = vector.load %arg10[%c0_44, %c0_45] : memref<8x256xf32, #tpu.memory_space<vmem>>, vector<8x128xf32>
      tpu.vector_store %arg10[%c0_44, %c0_45], %48 {strides = array<i32>} : memref<8x256xf32, #tpu.memory_space<vmem>>, vector<8x128xf32>,
    } else {
    }
    %c0_25 = arith.constant 0 : index
    %c0_26 = arith.constant 0 : index
    %54 = vector.load %arg10[%c0_25, %c0_26] : memref<8x256xf32, #tpu.memory_space<vmem>>, vector<8x128xf32>
    %55 = vector.extract_strided_slice %46 {offsets = [0, 128], sizes = [8, 128], strides = [1, 1]} : vector<8x256xf32> to vector<8x128xf32>
    %56 = arith.extui %2 : i1 to i32
    %c0_i32_27 = arith.constant 0 : i32
    %57 = arith.cmpi ne, %56, %c0_i32_27 : i32
    scf.if %57 {
      %c0_i32_44 = arith.constant 0 : i32
      %c8_i32_45 = arith.constant 8 : i32
      %109 = arith.addi %c0_i32_44, %c8_i32_45 : i32
      %c1_i32_46 = arith.constant 1 : i32
      scf.for %arg14 = %c0_i32_44 to %109 step %c1_i32_46  : i32 {
        %c1_i32_54 = arith.constant 1 : i32
        %118 = arith.muli %arg14, %c1_i32_54 : i32
        %c0_i32_55 = arith.constant 0 : i32
        %119 = arith.addi %c0_i32_55, %118 : i32
        %c0_i32_56 = arith.constant 0 : i32
        %c0_i32_57 = arith.constant 0 : i32
        %c1_i32_58 = arith.constant 1 : i32
        %c1_i32_59 = arith.constant 1 : i32
        %c0_i32_60 = arith.constant 0 : i32
        %c0_i32_61 = arith.constant 0 : i32
        %120 = tpu.memref_slice %arg8[%c0_i32_56, %c0_i32_57, %c0_i32_60, %c0_i32_61] : memref<2x16x8x128xf32, #tpu.memory_space<any>> -> memref<1x1x8x128xf32, #tpu.memory_space<any>>
        %121 = tpu.memref_squeeze %120 : memref<1x1x8x128xf32, #tpu.memory_space<any>> -> memref<8x128xf32, #tpu.memory_space<any>>
        %c0_i32_62 = arith.constant 0 : i32
        %c0_i32_63 = arith.constant 0 : i32
        %122 = tpu.memref_slice %arg12[%c1_i32_58, %119, %c0_i32_62, %c0_i32_63] : memref<2x8x8x128xf32, #tpu.memory_space<vmem>> -> memref<1x1x8x128xf32, #tpu.memory_space<vmem>>
        %123 = tpu.memref_squeeze %122 : memref<1x1x8x128xf32, #tpu.memory_space<vmem>> -> memref<8x128xf32, #tpu.memory_space<vmem>>
        %124 = tpu.memref_slice %arg13[%c1_i32_59] : memref<2x!tpu.dma_semaphore, #tpu.memory_space<semaphore_mem>> -> memref<1x!tpu.dma_semaphore, #tpu.memory_space<semaphore_mem>>
        %125 = tpu.memref_squeeze %124 : memref<1x!tpu.dma_semaphore, #tpu.memory_space<semaphore_mem>> -> memref<!tpu.dma_semaphore, #tpu.memory_space<semaphore_mem>>
        tpu.wait_dma2 semaphore(%125 : memref<!tpu.dma_semaphore, #tpu.memory_space<semaphore_mem>>) src(%121 : memref<8x128xf32, #tpu.memory_space<any>>) dst(%123 : memref<8x128xf32, #tpu.memory_space<vmem>>)
      }
      %c8_i32_47 = arith.constant 8 : i32
      %c1 = arith.constant 1 : index
      %c0_48 = arith.constant 0 : index
      %c0_49 = arith.constant 0 : index
      %c0_50 = arith.constant 0 : index
      %110 = vector.load %arg12[%c1, %c0_48, %c0_49, %c0_50] : memref<2x8x8x128xf32, #tpu.memory_space<vmem>>, vector<1x8x8x128xf32>
      %111 = vector.shape_cast %110 : vector<1x8x8x128xf32> to vector<8x8x128xf32>
      %112 = vector.extract_strided_slice %55 {offsets = [0, 0], sizes = [8, 8], strides = [1, 1]} : vector<8x128xf32> to vector<8x8xf32>
      %113 = vector.shape_cast %112 : vector<8x8xf32> to vector<8x8x1xf32>
      %114 = vector.broadcast %113 : vector<8x8x1xf32> to vector<8x8x128xf32>
      %115 = arith.mulf %114, %111 : vector<8x8x128xf32>
      %cst_51 = arith.constant dense<0.000000e+00> : vector<8x128xf32>
      %116 = vector.multi_reduction <add>, %115, %cst_51 [1] : vector<8x8x128xf32> to vector<8x128xf32>
      %c0_52 = arith.constant 0 : index
      %c128_53 = arith.constant 128 : index
      %117 = vector.load %arg10[%c0_52, %c128_53] : memref<8x256xf32, #tpu.memory_space<vmem>>, vector<8x128xf32>
      tpu.vector_store %arg10[%c0_52, %c128_53], %116 {strides = array<i32>} : memref<8x256xf32, #tpu.memory_space<vmem>>, vector<8x128xf32>,
    } else {
    }
    %true_28 = arith.constant true
    %58 = arith.xori %2, %true_28 : i1
    %59 = arith.extui %58 : i1 to i32
    %c0_i32_29 = arith.constant 0 : i32
    %60 = arith.cmpi ne, %59, %c0_i32_29 : i32
    scf.if %60 {
      %c0_44 = arith.constant 0 : index
      %c128_45 = arith.constant 128 : index
      %109 = vector.load %arg10[%c0_44, %c128_45] : memref<8x256xf32, #tpu.memory_space<vmem>>, vector<8x128xf32>
      tpu.vector_store %arg10[%c0_44, %c128_45], %55 {strides = array<i32>} : memref<8x256xf32, #tpu.memory_space<vmem>>, vector<8x128xf32>,
    } else {
    }
    %c0_30 = arith.constant 0 : index
    %c128 = arith.constant 128 : index
    %61 = vector.load %arg10[%c0_30, %c128] : memref<8x256xf32, #tpu.memory_space<vmem>>, vector<8x128xf32>
    %cst_31 = arith.constant dense<0.000000e+00> : vector<8xf32>
    %62 = vector.multi_reduction <add>, %54, %cst_31 [1] : vector<8x128xf32> to vector<8xf32>
    %63 = vector.shape_cast %62 : vector<8xf32> to vector<8x1xf32>
    %cst_32 = arith.constant 8.000000e+00 : f32
    %64 = vector.broadcast %cst_32 : f32 to vector<8x1xf32>
    %65 = arith.addf %63, %64 : vector<8x1xf32>
    %cst_33 = arith.constant dense<0.000000e+00> : vector<8xf32>
    %66 = vector.multi_reduction <add>, %61, %cst_33 [1] : vector<8x128xf32> to vector<8xf32>
    %67 = vector.shape_cast %66 : vector<8xf32> to vector<8x1xf32>
    %cst_34 = arith.constant 8.000000e+00 : f32
    %68 = vector.broadcast %cst_34 : f32 to vector<8x1xf32>
    %69 = arith.addf %67, %68 : vector<8x1xf32>
    %70 = tpu.reciprocal %65 {approx = true} : vector<8x1xf32> -> vector<8x1xf32>
    %71 = tpu.reciprocal %69 {approx = true} : vector<8x1xf32> -> vector<8x1xf32>
    %72 = vector.broadcast %70 : vector<8x1xf32> to vector<8x128xf32>
    %73 = arith.mulf %54, %72 : vector<8x128xf32>
    %74 = vector.broadcast %71 : vector<8x1xf32> to vector<8x128xf32>
    %75 = arith.mulf %61, %74 : vector<8x128xf32>
    %cst_35 = arith.constant 8.000000e+00 : f32
    %76 = vector.broadcast %cst_35 : f32 to vector<8x1xf32>
    %77 = arith.mulf %76, %70 : vector<8x1xf32>
    %cst_36 = arith.constant 8.000000e+00 : f32
    %78 = vector.broadcast %cst_36 : f32 to vector<8x1xf32>
    %79 = arith.mulf %78, %71 : vector<8x1xf32>
    %cst_37 = arith.constant dense<0.000000e+00> : vector<8xf32>
    %80 = vector.multi_reduction <add>, %73, %cst_37 [1] : vector<8x128xf32> to vector<8xf32>
    %81 = vector.shape_cast %80 : vector<8xf32> to vector<8x1xf32>
    %cst_38 = arith.constant dense<0.000000e+00> : vector<8xf32>
    %82 = vector.multi_reduction <add>, %75, %cst_38 [1] : vector<8x128xf32> to vector<8xf32>
    %83 = vector.shape_cast %82 : vector<8xf32> to vector<8x1xf32>
    %84 = arith.mulf %81, %83 : vector<8x1xf32>
    %85 = arith.mulf %73, %75 : vector<8x128xf32>
    %cst_39 = arith.constant dense<0.000000e+00> : vector<8xf32>
    %86 = vector.multi_reduction <add>, %85, %cst_39 [1] : vector<8x128xf32> to vector<8xf32>
    %87 = vector.shape_cast %86 : vector<8xf32> to vector<8x1xf32>
    %88 = arith.subf %84, %87 : vector<8x1xf32>
    %cst_40 = arith.constant 1.000000e+00 : f32
    %89 = vector.broadcast %cst_40 : f32 to vector<8x1xf32>
    %90 = arith.subf %89, %88 : vector<8x1xf32>
    %91 = tpu.reciprocal %90 {approx = true} : vector<8x1xf32> -> vector<8x1xf32>
    %92 = arith.mulf %73, %75 : vector<8x128xf32>
    %93 = vector.broadcast %79 : vector<8x1xf32> to vector<8x128xf32>
    %94 = arith.mulf %73, %93 : vector<8x128xf32>
    %95 = arith.addf %92, %94 : vector<8x128xf32>
    %96 = vector.broadcast %77 : vector<8x1xf32> to vector<8x128xf32>
    %97 = arith.mulf %75, %96 : vector<8x128xf32>
    %98 = arith.addf %95, %97 : vector<8x128xf32>
    %99 = vector.broadcast %91 : vector<8x1xf32> to vector<8x128xf32>
    %100 = arith.mulf %98, %99 : vector<8x128xf32>
    %101 = arith.mulf %77, %79 : vector<8x1xf32>
    %102 = arith.mulf %101, %91 : vector<8x1xf32>
    %103 = tpu.reciprocal %102 {approx = true} : vector<8x1xf32> -> vector<8x1xf32>
    %cst_41 = arith.constant 8.000000e+00 : f32
    %104 = vector.broadcast %cst_41 : f32 to vector<8x1xf32>
    %105 = arith.mulf %104, %103 : vector<8x1xf32>
    %106 = vector.broadcast %105 : vector<8x1xf32> to vector<8x128xf32>
    %107 = arith.mulf %100, %106 : vector<8x128xf32>
    %c0_42 = arith.constant 0 : index
    %c0_43 = arith.constant 0 : index
    %108 = vector.load %arg11[%c0_42, %c0_43] : memref<8x128xf32, #tpu.memory_space<vmem>>, vector<8x128xf32>
    tpu.vector_store %arg11[%c0_42, %c0_43], %107 {strides = array<i32>} : memref<8x128xf32, #tpu.memory_space<vmem>>, vector<8x128xf32>,
    return
  }
  func.func @transform_0(%arg0: i32, %arg1: memref<8xi32, #tpu.memory_space<smem>>, %arg2: memref<1xi32, #tpu.memory_space<smem>>) -> (i32, i32) {
    %c0_i32 = arith.constant 0 : i32
    %c0_i32_0 = arith.constant 0 : i32
    return %arg0, %c0_i32 : i32, i32
  }
  func.func @transform_1(%arg0: i32, %arg1: memref<8xi32, #tpu.memory_space<smem>>, %arg2: memref<1xi32, #tpu.memory_space<smem>>) -> (i32, i32) {
    %c0_i32 = arith.constant 0 : i32
    %c0_i32_0 = arith.constant 0 : i32
    %c0_i32_1 = arith.constant 0 : i32
    return %c0_i32, %c0_i32_0 : i32, i32
  }
  func.func @transform_2(%arg0: i32, %arg1: memref<8xi32, #tpu.memory_space<smem>>, %arg2: memref<1xi32, #tpu.memory_space<smem>>) -> (i32, i32) {
    %c0_i32 = arith.constant 0 : i32
    %c0_i32_0 = arith.constant 0 : i32
    %c0_i32_1 = arith.constant 0 : i32
    return %c0_i32, %c0_i32_0 : i32, i32
  }
  func.func @transform_3(%arg0: i32, %arg1: memref<8xi32, #tpu.memory_space<smem>>, %arg2: memref<1xi32, #tpu.memory_space<smem>>) -> (i32, i32) {
    %c0_i32 = arith.constant 0 : i32
    %c0_i32_0 = arith.constant 0 : i32
    %c0_i32_1 = arith.constant 0 : i32
    return %c0_i32, %c0_i32_0 : i32, i32
  }
  func.func @transform_4(%arg0: i32, %arg1: memref<8xi32, #tpu.memory_space<smem>>, %arg2: memref<1xi32, #tpu.memory_space<smem>>) -> (i32, i32) {
    %c0_i32 = arith.constant 0 : i32
    %c0_i32_0 = arith.constant 0 : i32
    %c0_i32_1 = arith.constant 0 : i32
    return %c0_i32, %c0_i32_0 : i32, i32
  }
  func.func @transform_6(%arg0: i32, %arg1: memref<8xi32, #tpu.memory_space<smem>>, %arg2: memref<1xi32, #tpu.memory_space<smem>>) -> (i32, i32) {
    %c0_i32 = arith.constant 0 : i32
    %c0_i32_0 = arith.constant 0 : i32
    return %arg0, %c0_i32 : i32, i32
  }
  func.func @transform_7(%arg0: i32, %arg1: memref<8xi32, #tpu.memory_space<smem>>, %arg2: memref<1xi32, #tpu.memory_space<smem>>) -> (i32, i32) {
    %c0_i32 = arith.constant 0 : i32
    %c0_i32_0 = arith.constant 0 : i32
    return %arg0, %c0_i32 : i32, i32
  }
  func.func @transform_8(%arg0: i32, %arg1: memref<8xi32, #tpu.memory_space<smem>>, %arg2: memref<1xi32, #tpu.memory_space<smem>>) -> (i32, i32) {
    %c0_i32 = arith.constant 0 : i32
    %c0_i32_0 = arith.constant 0 : i32
    return %arg0, %c0_i32 : i32, i32
  }
}

</mosaic_0001>

<llo_original>
// kernel: tpu_custom_call.1
$region0: #{tpu_custom_call.1}
  #allocation0 [shape = 'u32[]', space=smem, size = 0x4, offset = 0x4, fixed_abs, tag = 'smem constant byte address 0x4 - core index']
  #allocation1 [shape = 'u32[144,128]{1,0:T(1,128)}', space=vmem, size = 0x12000, scoped, tag = 'internal scratch']
  #allocation2 [shape = 'f32[2,8,8,128]{3,2,1,0:T(8,128)}', space=vmem, size = 0x10000, scoped, tag = 'scratch operand']
  #allocation3 [shape = 's32[2]{0}', space=sflag, size = 0x8, scoped, tag = 'scratch operand']
  #allocation4 [shape = 's32[1]{0}', space=sflag, size = 0x4, scoped, tag = 'scoped memory for tpu_custom_call.1']
  #allocation5 [shape = 'u8[512]{0}', space=smem, size = 0x200, scoped, tag = 'prefetched SMEM operand 0']
  #allocation6 [shape = 's32[1]{0:T(128)S(6)}', space=smem, size = 0x200, scoped, tag = 'prefetched SMEM operand 1']
  #allocation17 [shape = 's32[]', space=sflag, size = 0x4, offset = 0, fixed_abs, tag = 'sflag constant byte address 0x0 - dummy sync flag']
  #allocation18 [shape = 's32[]', space=sflag, size = 0x4, offset = 0, fixed_abs, tag = 'sflag constant byte address 0x0 - dummy sync flag']
  #allocation19 [shape = 'u32[]', space=smem, size = 0x4, offset = 0x44, fixed_abs, tag = 'smem constant byte address 0x44 - assertion arg 0']
  #allocation20 [shape = 'u32[]', space=smem, size = 0x4, offset = 0x48, fixed_abs, tag = 'smem constant byte address 0x48 - assertion arg 1']
  #allocation21 [shape = 's32[]', space=sflag, size = 0x4, offset = 0, fixed_abs, tag = 'sflag constant byte address 0x0 - dummy sync flag']
  #allocation22 [shape = 's32[]', space=sflag, size = 0x4, offset = 0, fixed_abs, tag = 'sflag constant byte address 0x0 - dummy sync flag']
  %s0 = inlined_call_operand.vmem [shape: s32[8], index: 0, kind: input, shape index: {}]
  %s1 = inlined_call_operand.<no memory space> [shape: s32[1], index: 1, kind: input, shape index: {}]
  %s2 = inlined_call_operand.hbm [shape: bf16[8,256], index: 2, kind: input, shape index: {}]
  %s3 = inlined_call_operand.hbm [shape: bf16[256,256], index: 3, kind: input, shape index: {}]
  %s4 = inlined_call_operand.vmem [shape: f32[1,256], index: 4, kind: input, shape index: {}]
  %s5 = inlined_call_operand.hbm [shape: bf16[256,256], index: 5, kind: input, shape index: {}]
  %s6 = inlined_call_operand.vmem [shape: f32[1,256], index: 6, kind: input, shape index: {}]
  %s7 = inlined_call_operand.hbm [shape: f32[2,16,8,128], index: 7, kind: input, shape index: {}]
  %s8 = inlined_call_operand.hbm [shape: f32[8,256], index: 8, kind: output, shape index: {0}]
  %s9 = inlined_call_operand.hbm [shape: f32[8,256], index: 9, kind: output, shape index: {1}]
  %s10 = inlined_call_operand.hbm [shape: f32[8,128], index: 10, kind: output, shape index: {2}]
  %11 = xla_tuple %s8, %s9, %s10
  %s12 = sld [smem:[#allocation0]]
  $region114: #{tpu_custom_call.1} parent=0
    _
  %s14 = ssub.s32 1, %s12
  %s15 = scalar_select 0, %s14, %s12
  %s16 = sshll.u32 %s0, 4
  %s17 = int_to_ptr.vmem [resolvable:$true] %s16
  %19 = dma.vmem_to_smem %s17, 16, [#allocation5], [#allocation4]
  %20 = sst [smem:[#allocation6]] %s1
  %21 = dma.done [#allocation4], 16
  %22 = sfence
  $region1: #{tpu_custom_call.1} parent=0
    #allocation7 [shape = 'u8[4096]{0}', space=vmem, size = 0x1000, scoped, tag = 'input window, operand 2, single buffered']
    #allocation8 [shape = 's32[1]{0}', space=sflag, size = 0x4, scoped, tag = 'scoped memory for tpu_custom_call.1']
    #allocation9 [shape = 's32[1]{0}', space=sflag, size = 0x4, scoped, tag = 'scoped memory for tpu_custom_call.1']
    #allocation10 [shape = 'u8[131072]{0}', space=vmem, size = 0x20000, scoped, tag = 'input window, operand 3, single buffered']
    #allocation11 [shape = 's32[1]{0}', space=sflag, size = 0x4, scoped, tag = 'scoped memory for tpu_custom_call.1']
    #allocation12 [shape = 'u8[131072]{0}', space=vmem, size = 0x20000, scoped, tag = 'input window, operand 5, single buffered']
    #allocation13 [shape = 'u8[8192]{0}', space=vmem, size = 0x2000, scoped, tag = 'output window, operand 0, single buffered']
    #allocation14 [shape = 'u8[8192]{0}', space=vmem, size = 0x2000, scoped, tag = 'output window, operand 1, single buffered']
    #allocation15 [shape = 's32[1]{0}', space=sflag, size = 0x4, scoped, tag = 'scoped memory for tpu_custom_call.1']
    #allocation16 [shape = 'u8[4096]{0}', space=vmem, size = 0x1000, scoped, tag = 'output window, operand 2, single buffered']
    %23 = vsyncpa [#allocation8], 0
    %24 = vsyncpa [#allocation11], 0
    %25 = vsyncpa [#allocation9], 0
    %26 = vsyncpa [#allocation15], 0
    // Predicated region
    $region2: #{tpu_custom_call.1} parent=1 // pred_check
      _
    $region3: #{tpu_custom_call.1} parent=1 // pred_check_branch
      %28 = sbr.rel (0) target = $region5
    $region4: #{tpu_custom_call.1} parent=1 // pred_region
      %s30 = ssub.s32 128, 128
      %31 = vsyncadd [#allocation8], %s30
      %s33 = sshll.u32 [#allocation7], 4
      %s34 = int_to_ptr.vmem [resolvable:$true] %s33
      %36 = dma.hbm_to_vmem [thread:$0]  %s2, 128, %s34, [#allocation8]
    $region5: #{tpu_custom_call.1} parent=1 // pred_fallthru
      _
    // Predicated region
    $region6: #{tpu_custom_call.1} parent=1 // pred_check
      _
    $region7: #{tpu_custom_call.1} parent=1 // pred_check_branch
      %38 = sbr.rel (0) target = $region9
    $region8: #{tpu_custom_call.1} parent=1 // pred_region
      %s40 = ssub.s32 4096, 4096
      %41 = vsyncadd [#allocation11], %s40
      %s42 = sshll.u32 [#allocation10], 4
      %s43 = int_to_ptr.vmem [resolvable:$true] %s42
      %48 = dma.hbm_to_vmem [thread:$0]  %s3, 4096, %s43, [#allocation11], 128, 128, 8
    $region9: #{tpu_custom_call.1} parent=1 // pred_fallthru
      _
    // Predicated region
    $region10: #{tpu_custom_call.1} parent=1 // pred_check
      _
    $region11: #{tpu_custom_call.1} parent=1 // pred_check_branch
      %50 = sbr.rel (0) target = $region13
    $region12: #{tpu_custom_call.1} parent=1 // pred_region
      _
    $region13: #{tpu_custom_call.1} parent=1 // pred_fallthru
      _
    // Predicated region
    $region14: #{tpu_custom_call.1} parent=1 // pred_check
      _
    $region15: #{tpu_custom_call.1} parent=1 // pred_check_branch
      %52 = sbr.rel (0) target = $region17
    $region16: #{tpu_custom_call.1} parent=1 // pred_region
      %s54 = ssub.s32 4096, 4096
      %55 = vsyncadd [#allocation11], %s54
      %s56 = sshll.u32 [#allocation12], 4
      %s57 = int_to_ptr.vmem [resolvable:$true] %s56
      %62 = dma.hbm_to_vmem [thread:$0]  %s5, 4096, %s57, [#allocation11], 128, 128, 8
    $region17: #{tpu_custom_call.1} parent=1 // pred_fallthru
      _
    // Predicated region
    $region18: #{tpu_custom_call.1} parent=1 // pred_check
      _
    $region19: #{tpu_custom_call.1} parent=1 // pred_check_branch
      %64 = sbr.rel (0) target = $region21
    $region20: #{tpu_custom_call.1} parent=1 // pred_region
      _
    $region21: #{tpu_custom_call.1} parent=1 // pred_fallthru
      _
    // Predicated region
    $region22: #{tpu_custom_call.1} parent=1 // pred_check
      _
    $region23: #{tpu_custom_call.1} parent=1 // pred_check_branch
      %66 = sbr.rel (0) target = $region25
    $region24: #{tpu_custom_call.1} parent=1 // pred_region
      %67 = dma.done [#allocation8], 128
    $region25: #{tpu_custom_call.1} parent=1 // pred_fallthru
      _
    // Predicated region
    $region26: #{tpu_custom_call.1} parent=1 // pred_check
      _
    $region27: #{tpu_custom_call.1} parent=1 // pred_check_branch
      %69 = sbr.rel (0) target = $region29
    $region28: #{tpu_custom_call.1} parent=1 // pred_region
      %70 = dma.done [#allocation11], 4096
    $region29: #{tpu_custom_call.1} parent=1 // pred_fallthru
      _
    // Predicated region
    $region30: #{tpu_custom_call.1} parent=1 // pred_check
      _
    $region31: #{tpu_custom_call.1} parent=1 // pred_check_branch
      %72 = sbr.rel (0) target = $region33
    $region32: #{tpu_custom_call.1} parent=1 // pred_region
      %73 = dma.done [#allocation11], 4096
    $region33: #{tpu_custom_call.1} parent=1 // pred_fallthru
      _
    %s74 = smul.u32 0, 8
    %s75 = sld [smem:[#allocation6]]
    %p76 = scmp.ne.s32.totalorder %s75, 0
    // Predicated region
    $region34: #{tpu_custom_call.1} parent=1 // pred_check
      %p77 = pneg %p76
    $region35: #{tpu_custom_call.1} parent=1 // pred_check_branch
      %79 = sbr.rel (%p77) target = $region37
    $region36: #{tpu_custom_call.1} parent=1 // pred_region
      loop: start=0, step=1, limit=8
      $region38: #{tpu_custom_call.1} parent=36 // loop_pre_header
        _
      $region39: #{tpu_custom_call.1} parent=36 // loop_header
        %s81 = sphi 0, %s85
        %p82 = scmp.ge.s32.totalorder %s81, 8
      $region40: #{tpu_custom_call.1} parent=36 // loop_header_branch
        %84 = sbr.rel (%p82) target = $region44
      $region41: #{tpu_custom_call.1} parent=36 // loop_body
        %s86 = sadd.s32 %s74, %s81
        %s87 = sld [smem:[#allocation5 + %s86]]
        %s88 = smul.u32 %s87, 8
        %s89 = smul.addr %s88, 16
        %s90 = scalar_lea.hbm %s7, %s89
        %s91 = smul.u32 %s81, 8
        %s92 = scalar_lea.vmem [#allocation2], %s91
        // Predicated region
        $region45: #{tpu_custom_call.1} parent=41 // pred_check
          _
        $region46: #{tpu_custom_call.1} parent=41 // pred_check_branch
          %94 = sbr.rel target = $region48
        $region47: #{tpu_custom_call.1} parent=41 // pred_region
          %95 = sst [smem:[#allocation19]] [#allocation18]
          %96 = sst [smem:[#allocation20]] [#allocation17]
        $region48: #{tpu_custom_call.1} parent=41 // pred_fallthru
          _
        %98 = shalt.err (0)
        %s100 = sshll.u32 %s92, 4
        %s101 = int_to_ptr.vmem [resolvable:$true] %s100
        %103 = dma.hbm_to_vmem [thread:$0]  %s90, 128, %s101, [#allocation3]
      $region42: #{tpu_custom_call.1} parent=36 // loop_footer
        %s85 = sadd.s32 1, %s81
      $region43: #{tpu_custom_call.1} parent=36 // loop_footer_branch
        %80 = sbr.rel target = $region39
      $region44: #{tpu_custom_call.1} parent=36 // loop_exit
        _
    $region37: #{tpu_custom_call.1} parent=1 // pred_fallthru
      _
    %v104 = vld [vmem:[#allocation7] sm:$0xff]
    %v105 = vld [vmem:[#allocation10] sm:$0xff]
    %v106 = vld [vmem:[#allocation10 + $0x8] sm:$0xff]
    %v107 = vld [vmem:[#allocation10 + $0x10] sm:$0xff]
    %v108 = vld [vmem:[#allocation10 + $0x18] sm:$0xff]
    %v109 = vld [vmem:[#allocation10 + $0x20] sm:$0xff]
    %v110 = vld [vmem:[#allocation10 + $0x28] sm:$0xff]
    %v111 = vld [vmem:[#allocation10 + $0x30] sm:$0xff]
    %v112 = vld [vmem:[#allocation10 + $0x38] sm:$0xff]
    %v113 = vld [vmem:[#allocation10 + $0x40] sm:$0xff]
    %v114 = vld [vmem:[#allocation10 + $0x48] sm:$0xff]
    %v115 = vld [vmem:[#allocation10 + $0x50] sm:$0xff]
    %v116 = vld [vmem:[#allocation10 + $0x58] sm:$0xff]
    %v117 = vld [vmem:[#allocation10 + $0x60] sm:$0xff]
    %v118 = vld [vmem:[#allocation10 + $0x68] sm:$0xff]
    %v119 = vld [vmem:[#allocation10 + $0x70] sm:$0xff]
    %v120 = vld [vmem:[#allocation10 + $0x78] sm:$0xff]
    %v121 = vld [vmem:[#allocation10 + $0x80] sm:$0xff]
    %v122 = vld [vmem:[#allocation10 + $0x88] sm:$0xff]
    %v123 = vld [vmem:[#allocation10 + $0x90] sm:$0xff]
    %v124 = vld [vmem:[#allocation10 + $0x98] sm:$0xff]
    %v125 = vld [vmem:[#allocation10 + $0xa0] sm:$0xff]
    %v126 = vld [vmem:[#allocation10 + $0xa8] sm:$0xff]
    %v127 = vld [vmem:[#allocation10 + $0xb0] sm:$0xff]
    %v128 = vld [vmem:[#allocation10 + $0xb8] sm:$0xff]
    %v129 = vld [vmem:[#allocation10 + $0xc0] sm:$0xff]
    %v130 = vld [vmem:[#allocation10 + $0xc8] sm:$0xff]
    %v131 = vld [vmem:[#allocation10 + $0xd0] sm:$0xff]
    %v132 = vld [vmem:[#allocation10 + $0xd8] sm:$0xff]
    %v133 = vld [vmem:[#allocation10 + $0xe0] sm:$0xff]
    %v134 = vld [vmem:[#allocation10 + $0xe8] sm:$0xff]
    %v135 = vld [vmem:[#allocation10 + $0xf0] sm:$0xff]
    %v136 = vld [vmem:[#allocation10 + $0xf8] sm:$0xff]
    %v137 = vld [vmem:[%s4] sm:$0x3]
    %v139 = vlaneseq
    %v140 = vshrl.u32 %v139, 7
    %v141 = vsub.s32 0, %v140
    %v142 = vrot.slane %v137, %v141
    %v143 = vlaneseq
    %v144 = vshrl.u32 %v143, 7
    %v145 = vsub.s32 1, %v144
    %v146 = vrot.slane %v137, %v145
    %v150 = vunpack.c.l.b16 %v104
    %v151 = vunpack.c.h.b16 %v104
    %v152 = vpack.c.b16 %v150, %v150
    %v153 = vpack.c.b16 %v151, %v151
    %v188 = vunpack.c.l.b16 %v105
    %v189 = vunpack.c.h.b16 %v105
    %v190 = vunpack.c.l.b16 %v106
    %v191 = vunpack.c.h.b16 %v106
    %v192 = vunpack.c.l.b16 %v107
    %v193 = vunpack.c.h.b16 %v107
    %v194 = vunpack.c.l.b16 %v108
    %v195 = vunpack.c.h.b16 %v108
    %v196 = vunpack.c.l.b16 %v109
    %v197 = vunpack.c.h.b16 %v109
    %v198 = vunpack.c.l.b16 %v110
    %v199 = vunpack.c.h.b16 %v110
    %v200 = vunpack.c.l.b16 %v111
    %v201 = vunpack.c.h.b16 %v111
    %v202 = vunpack.c.l.b16 %v112
    %v203 = vunpack.c.h.b16 %v112
    %v204 = vunpack.c.l.b16 %v113
    %v205 = vunpack.c.h.b16 %v113
    %v206 = vunpack.c.l.b16 %v114
    %v207 = vunpack.c.h.b16 %v114
    %v208 = vunpack.c.l.b16 %v115
    %v209 = vunpack.c.h.b16 %v115
    %v210 = vunpack.c.l.b16 %v116
    %v211 = vunpack.c.h.b16 %v116
    %v212 = vunpack.c.l.b16 %v117
    %v213 = vunpack.c.h.b16 %v117
    %v214 = vunpack.c.l.b16 %v118
    %v215 = vunpack.c.h.b16 %v118
    %v216 = vunpack.c.l.b16 %v119
    %v217 = vunpack.c.h.b16 %v119
    %v218 = vunpack.c.l.b16 %v120
    %v219 = vunpack.c.h.b16 %v120
    %v220 = vunpack.c.l.b16 %v121
    %v221 = vunpack.c.h.b16 %v121
    %v222 = vunpack.c.l.b16 %v122
    %v223 = vunpack.c.h.b16 %v122
    %v224 = vunpack.c.l.b16 %v123
    %v225 = vunpack.c.h.b16 %v123
    %v226 = vunpack.c.l.b16 %v124
    %v227 = vunpack.c.h.b16 %v124
    %v228 = vunpack.c.l.b16 %v125
    %v229 = vunpack.c.h.b16 %v125
    %v230 = vunpack.c.l.b16 %v126
    %v231 = vunpack.c.h.b16 %v126
    %v232 = vunpack.c.l.b16 %v127
    %v233 = vunpack.c.h.b16 %v127
    %v234 = vunpack.c.l.b16 %v128
    %v235 = vunpack.c.h.b16 %v128
    %v236 = vunpack.c.l.b16 %v129
    %v237 = vunpack.c.h.b16 %v129
    %v238 = vunpack.c.l.b16 %v130
    %v239 = vunpack.c.h.b16 %v130
    %v240 = vunpack.c.l.b16 %v131
    %v241 = vunpack.c.h.b16 %v131
    %v242 = vunpack.c.l.b16 %v132
    %v243 = vunpack.c.h.b16 %v132
    %v244 = vunpack.c.l.b16 %v133
    %v245 = vunpack.c.h.b16 %v133
    %v246 = vunpack.c.l.b16 %v134
    %v247 = vunpack.c.h.b16 %v134
    %v248 = vunpack.c.l.b16 %v135
    %v249 = vunpack.c.h.b16 %v135
    %v250 = vunpack.c.l.b16 %v136
    %v251 = vunpack.c.h.b16 %v136
    %v252 = vpack.c.b16 %v190, %v188
    %v253 = vpack.c.b16 %v191, %v189
    %v254 = vpack.c.b16 %v194, %v192
    %v255 = vpack.c.b16 %v195, %v193
    %v256 = vpack.c.b16 %v198, %v196
    %v257 = vpack.c.b16 %v199, %v197
    %v258 = vpack.c.b16 %v202, %v200
    %v259 = vpack.c.b16 %v203, %v201
    %v260 = vpack.c.b16 %v206, %v204
    %v261 = vpack.c.b16 %v207, %v205
    %v262 = vpack.c.b16 %v210, %v208
    %v263 = vpack.c.b16 %v211, %v209
    %v264 = vpack.c.b16 %v214, %v212
    %v265 = vpack.c.b16 %v215, %v213
    %v266 = vpack.c.b16 %v218, %v216
    %v267 = vpack.c.b16 %v219, %v217
    %v268 = vpack.c.b16 %v222, %v220
    %v269 = vpack.c.b16 %v223, %v221
    %v270 = vpack.c.b16 %v226, %v224
    %v271 = vpack.c.b16 %v227, %v225
    %v272 = vpack.c.b16 %v230, %v228
    %v273 = vpack.c.b16 %v231, %v229
    %v274 = vpack.c.b16 %v234, %v232
    %v275 = vpack.c.b16 %v235, %v233
    %v276 = vpack.c.b16 %v238, %v236
    %v277 = vpack.c.b16 %v239, %v237
    %v278 = vpack.c.b16 %v242, %v240
    %v279 = vpack.c.b16 %v243, %v241
    %v280 = vpack.c.b16 %v246, %v244
    %v281 = vpack.c.b16 %v247, %v245
    %v282 = vpack.c.b16 %v250, %v248
    %v283 = vpack.c.b16 %v251, %v249
    %316 = vmatprep.subr.bf16.mxu0 %v253
    %317 = vmatpush1.bf16.msra.mxu0 %v252
    %318 = vmatprep.subr.bf16.mxu0 %v255
    %319 = vmatpush1.bf16.msra.mxu0 %v254
    %320 = vmatprep.subr.bf16.mxu0 %v257
    %321 = vmatpush1.bf16.msra.mxu0 %v256
    %322 = vmatprep.subr.bf16.mxu0 %v259
    %323 = vmatpush1.bf16.msra.mxu0 %v258
    %324 = vmatprep.subr.bf16.mxu0 %v261
    %325 = vmatpush1.bf16.msra.mxu0 %v260
    %326 = vmatprep.subr.bf16.mxu0 %v263
    %327 = vmatpush1.bf16.msra.mxu0 %v262
    %328 = vmatprep.subr.bf16.mxu0 %v265
    %329 = vmatpush1.bf16.msra.mxu0 %v264
    %330 = vmatprep.subr.bf16.mxu0 %v267
    %331 = vmatpush1.bf16.msra.mxu0 %v266
    %332 = vmatprep.subr.bf16.mxu0 %v269
    %333 = vmatpush1.bf16.msra.mxu0 %v268
    %334 = vmatprep.subr.bf16.mxu0 %v271
    %335 = vmatpush1.bf16.msra.mxu0 %v270
    %336 = vmatprep.subr.bf16.mxu0 %v273
    %337 = vmatpush1.bf16.msra.mxu0 %v272
    %338 = vmatprep.subr.bf16.mxu0 %v275
    %339 = vmatpush1.bf16.msra.mxu0 %v274
    %340 = vmatprep.subr.bf16.mxu0 %v277
    %341 = vmatpush1.bf16.msra.mxu0 %v276
    %342 = vmatprep.subr.bf16.mxu0 %v279
    %343 = vmatpush1.bf16.msra.mxu0 %v278
    %344 = vmatprep.subr.bf16.mxu0 %v281
    %345 = vmatpush1.bf16.msra.mxu0 %v280
    %346 = vmatprep.subr.bf16.mxu0 %v283
    %347 = vmatpush1.bf16.msra.mxu0 %v282
    %348 = vmatprep.mubr.bf16.mxu0 %v153
    %349 = vmatmul.mubr.bf16.gmra.mrb[0].mxu0 %v152
    %v350 = vpop.f32.mrb[0].mxu0
    %v351 = vadd.f32 %v142, %v350
    %v352 = vpop.f32.mrb[0].mxu0
    %v353 = vadd.f32 %v146, %v352
    %v354 = vpop.f32.mrb[0].mxu0
    %v355 = vpop.f32.mrb[0].mxu0
    %356 = vdwg.mxu0
    %v357 = vmax.f32 %v351, 0.0
    %v358 = vmax.f32 %v353, 0.0
    %v359 = vpack.c.bf16 %v357, %v357
    %v360 = vpack.c.bf16 %v358, %v358
    %v361 = vld [vmem:[#allocation12] sm:$0xff]
    %v362 = vld [vmem:[#allocation12 + $0x8] sm:$0xff]
    %v363 = vld [vmem:[#allocation12 + $0x10] sm:$0xff]
    %v364 = vld [vmem:[#allocation12 + $0x18] sm:$0xff]
    %v365 = vld [vmem:[#allocation12 + $0x20] sm:$0xff]
    %v366 = vld [vmem:[#allocation12 + $0x28] sm:$0xff]
    %v367 = vld [vmem:[#allocation12 + $0x30] sm:$0xff]
    %v368 = vld [vmem:[#allocation12 + $0x38] sm:$0xff]
    %v369 = vld [vmem:[#allocation12 + $0x40] sm:$0xff]
    %v370 = vld [vmem:[#allocation12 + $0x48] sm:$0xff]
    %v371 = vld [vmem:[#allocation12 + $0x50] sm:$0xff]
    %v372 = vld [vmem:[#allocation12 + $0x58] sm:$0xff]
    %v373 = vld [vmem:[#allocation12 + $0x60] sm:$0xff]
    %v374 = vld [vmem:[#allocation12 + $0x68] sm:$0xff]
    %v375 = vld [vmem:[#allocation12 + $0x70] sm:$0xff]
    %v376 = vld [vmem:[#allocation12 + $0x78] sm:$0xff]
    %v377 = vld [vmem:[#allocation12 + $0x80] sm:$0xff]
    %v378 = vld [vmem:[#allocation12 + $0x88] sm:$0xff]
    %v379 = vld [vmem:[#allocation12 + $0x90] sm:$0xff]
    %v380 = vld [vmem:[#allocation12 + $0x98] sm:$0xff]
    %v381 = vld [vmem:[#allocation12 + $0xa0] sm:$0xff]
    %v382 = vld [vmem:[#allocation12 + $0xa8] sm:$0xff]
    %v383 = vld [vmem:[#allocation12 + $0xb0] sm:$0xff]
    %v384 = vld [vmem:[#allocation12 + $0xb8] sm:$0xff]
    %v385 = vld [vmem:[#allocation12 + $0xc0] sm:$0xff]
    %v386 = vld [vmem:[#allocation12 + $0xc8] sm:$0xff]
    %v387 = vld [vmem:[#allocation12 + $0xd0] sm:$0xff]
    %v388 = vld [vmem:[#allocation12 + $0xd8] sm:$0xff]
    %v389 = vld [vmem:[#allocation12 + $0xe0] sm:$0xff]
    %v390 = vld [vmem:[#allocation12 + $0xe8] sm:$0xff]
    %v391 = vld [vmem:[#allocation12 + $0xf0] sm:$0xff]
    %v392 = vld [vmem:[#allocation12 + $0xf8] sm:$0xff]
    %v393 = vld [vmem:[%s6] sm:$0x3]
    %v395 = vlaneseq
    %v396 = vshrl.u32 %v395, 7
    %v397 = vsub.s32 0, %v396
    %v398 = vrot.slane %v393, %v397
    %v399 = vlaneseq
    %v400 = vshrl.u32 %v399, 7
    %v401 = vsub.s32 1, %v400
    %v402 = vrot.slane %v393, %v401
    %v437 = vunpack.c.l.b16 %v361
    %v438 = vunpack.c.h.b16 %v361
    %v439 = vunpack.c.l.b16 %v362
    %v440 = vunpack.c.h.b16 %v362
    %v441 = vunpack.c.l.b16 %v363
    %v442 = vunpack.c.h.b16 %v363
    %v443 = vunpack.c.l.b16 %v364
    %v444 = vunpack.c.h.b16 %v364
    %v445 = vunpack.c.l.b16 %v365
    %v446 = vunpack.c.h.b16 %v365
    %v447 = vunpack.c.l.b16 %v366
    %v448 = vunpack.c.h.b16 %v366
    %v449 = vunpack.c.l.b16 %v367
    %v450 = vunpack.c.h.b16 %v367
    %v451 = vunpack.c.l.b16 %v368
    %v452 = vunpack.c.h.b16 %v368
    %v453 = vunpack.c.l.b16 %v369
    %v454 = vunpack.c.h.b16 %v369
    %v455 = vunpack.c.l.b16 %v370
    %v456 = vunpack.c.h.b16 %v370
    %v457 = vunpack.c.l.b16 %v371
    %v458 = vunpack.c.h.b16 %v371
    %v459 = vunpack.c.l.b16 %v372
    %v460 = vunpack.c.h.b16 %v372
    %v461 = vunpack.c.l.b16 %v373
    %v462 = vunpack.c.h.b16 %v373
    %v463 = vunpack.c.l.b16 %v374
    %v464 = vunpack.c.h.b16 %v374
    %v465 = vunpack.c.l.b16 %v375
    %v466 = vunpack.c.h.b16 %v375
    %v467 = vunpack.c.l.b16 %v376
    %v468 = vunpack.c.h.b16 %v376
    %v469 = vunpack.c.l.b16 %v377
    %v470 = vunpack.c.h.b16 %v377
    %v471 = vunpack.c.l.b16 %v378
    %v472 = vunpack.c.h.b16 %v378
    %v473 = vunpack.c.l.b16 %v379
    %v474 = vunpack.c.h.b16 %v379
    %v475 = vunpack.c.l.b16 %v380
    %v476 = vunpack.c.h.b16 %v380
    %v477 = vunpack.c.l.b16 %v381
    %v478 = vunpack.c.h.b16 %v381
    %v479 = vunpack.c.l.b16 %v382
    %v480 = vunpack.c.h.b16 %v382
    %v481 = vunpack.c.l.b16 %v383
    %v482 = vunpack.c.h.b16 %v383
    %v483 = vunpack.c.l.b16 %v384
    %v484 = vunpack.c.h.b16 %v384
    %v485 = vunpack.c.l.b16 %v385
    %v486 = vunpack.c.h.b16 %v385
    %v487 = vunpack.c.l.b16 %v386
    %v488 = vunpack.c.h.b16 %v386
    %v489 = vunpack.c.l.b16 %v387
    %v490 = vunpack.c.h.b16 %v387
    %v491 = vunpack.c.l.b16 %v388
    %v492 = vunpack.c.h.b16 %v388
    %v493 = vunpack.c.l.b16 %v389
    %v494 = vunpack.c.h.b16 %v389
    %v495 = vunpack.c.l.b16 %v390
    %v496 = vunpack.c.h.b16 %v390
    %v497 = vunpack.c.l.b16 %v391
    %v498 = vunpack.c.h.b16 %v391
    %v499 = vunpack.c.l.b16 %v392
    %v500 = vunpack.c.h.b16 %v392
    %v501 = vpack.c.b16 %v439, %v437
    %v502 = vpack.c.b16 %v440, %v438
    %v503 = vpack.c.b16 %v443, %v441
    %v504 = vpack.c.b16 %v444, %v442
    %v505 = vpack.c.b16 %v447, %v445
    %v506 = vpack.c.b16 %v448, %v446
    %v507 = vpack.c.b16 %v451, %v449
    %v508 = vpack.c.b16 %v452, %v450
    %v509 = vpack.c.b16 %v455, %v453
    %v510 = vpack.c.b16 %v456, %v454
    %v511 = vpack.c.b16 %v459, %v457
    %v512 = vpack.c.b16 %v460, %v458
    %v513 = vpack.c.b16 %v463, %v461
    %v514 = vpack.c.b16 %v464, %v462
    %v515 = vpack.c.b16 %v467, %v465
    %v516 = vpack.c.b16 %v468, %v466
    %v517 = vpack.c.b16 %v471, %v469
    %v518 = vpack.c.b16 %v472, %v470
    %v519 = vpack.c.b16 %v475, %v473
    %v520 = vpack.c.b16 %v476, %v474
    %v521 = vpack.c.b16 %v479, %v477
    %v522 = vpack.c.b16 %v480, %v478
    %v523 = vpack.c.b16 %v483, %v481
    %v524 = vpack.c.b16 %v484, %v482
    %v525 = vpack.c.b16 %v487, %v485
    %v526 = vpack.c.b16 %v488, %v486
    %v527 = vpack.c.b16 %v491, %v489
    %v528 = vpack.c.b16 %v492, %v490
    %v529 = vpack.c.b16 %v495, %v493
    %v530 = vpack.c.b16 %v496, %v494
    %v531 = vpack.c.b16 %v499, %v497
    %v532 = vpack.c.b16 %v500, %v498
    %565 = vmatprep.subr.bf16.mxu0 %v502
    %566 = vmatpush1.bf16.msra.mxu0 %v501
    %567 = vmatprep.subr.bf16.mxu0 %v504
    %568 = vmatpush1.bf16.msra.mxu0 %v503
    %569 = vmatprep.subr.bf16.mxu0 %v506
    %570 = vmatpush1.bf16.msra.mxu0 %v505
    %571 = vmatprep.subr.bf16.mxu0 %v508
    %572 = vmatpush1.bf16.msra.mxu0 %v507
    %573 = vmatprep.subr.bf16.mxu0 %v510
    %574 = vmatpush1.bf16.msra.mxu0 %v509
    %575 = vmatprep.subr.bf16.mxu0 %v512
    %576 = vmatpush1.bf16.msra.mxu0 %v511
    %577 = vmatprep.subr.bf16.mxu0 %v514
    %578 = vmatpush1.bf16.msra.mxu0 %v513
    %579 = vmatprep.subr.bf16.mxu0 %v516
    %580 = vmatpush1.bf16.msra.mxu0 %v515
    %581 = vmatprep.subr.bf16.mxu0 %v518
    %582 = vmatpush1.bf16.msra.mxu0 %v517
    %583 = vmatprep.subr.bf16.mxu0 %v520
    %584 = vmatpush1.bf16.msra.mxu0 %v519
    %585 = vmatprep.subr.bf16.mxu0 %v522
    %586 = vmatpush1.bf16.msra.mxu0 %v521
    %587 = vmatprep.subr.bf16.mxu0 %v524
    %588 = vmatpush1.bf16.msra.mxu0 %v523
    %589 = vmatprep.subr.bf16.mxu0 %v526
    %590 = vmatpush1.bf16.msra.mxu0 %v525
    %591 = vmatprep.subr.bf16.mxu0 %v528
    %592 = vmatpush1.bf16.msra.mxu0 %v527
    %593 = vmatprep.subr.bf16.mxu0 %v530
    %594 = vmatpush1.bf16.msra.mxu0 %v529
    %595 = vmatprep.subr.bf16.mxu0 %v532
    %596 = vmatpush1.bf16.msra.mxu0 %v531
    %597 = vmatprep.mubr.bf16.mxu0 %v360
    %598 = vmatmul.mubr.bf16.gmra.mrb[0].mxu0 %v359
    %v599 = vpop.f32.mrb[0].mxu0
    %v600 = vadd.f32 %v398, %v599
    %v601 = vpop.f32.mrb[0].mxu0
    %v602 = vadd.f32 %v402, %v601
    %v603 = vpop.f32.mrb[0].mxu0
    %v604 = vpop.f32.mrb[0].mxu0
    %605 = vdwg.mxu0
    %vm606 = vcmp.gt.f32.partialorder %v600, 20.0
    %vm607 = vcmp.gt.f32.partialorder %v602, 20.0
    %v608 = vmin.f32 %v600, 20.0
    %v609 = vmin.f32 %v602, 20.0
    %v610 = vmul.f32 %v608, 1.442695
    %v611 = vpow.pop %v610
    %v612 = vmul.f32 %v609, 1.442695
    %v613 = vpow.pop %v612
    %v614 = vadd.f32 %v611, 1.0
    %v615 = vlog2.pop %v614
    %v616 = vmul.f32 %v615, 0.6931472
    %v617 = vmul.f32 -0.5, %v611
    %v618 = vadd.f32 %v617, 1.0
    %v619 = vmul.f32 %v618, %v611
    %v620 = vand.u32 2147483647, %v611
    %vm621 = vcmp.lt.f32.partialorder %v620, 0.0004427343
    %v622 = vsel %vm621, %v619, %v616
    %v623 = vadd.f32 %v613, 1.0
    %v624 = vlog2.pop %v623
    %v625 = vmul.f32 %v624, 0.6931472
    %v626 = vmul.f32 -0.5, %v613
    %v627 = vadd.f32 %v626, 1.0
    %v628 = vmul.f32 %v627, %v613
    %v629 = vand.u32 2147483647, %v613
    %vm630 = vcmp.lt.f32.partialorder %v629, 0.0004427343
    %v631 = vsel %vm630, %v628, %v625
    %v632 = vsel %vm606, %v600, %v622
    %v633 = vsel %vm607, %v602, %v631
    %v634 = vlaneseq
    %v635 = vand.u32 %v634, 127
    %v636 = vadd.s32 %v635, 128
    %vm637 = vcmp.lt.s32.totalorder %v635, 0
    %v638 = vsub.s32 0, %v635
    %v639 = vsel %vm637, %v638, %v635
    %v640 = vshrl.u32 %v639, 7
    %v641 = vand.u32 %v639, 127
    %v642 = vsub.s32 0, %v641
    %v643 = vsel %vm637, %v642, %v641
    %vm644 = vcmp.lt.s32.totalorder %v636, 0
    %v645 = vsub.s32 0, %v636
    %v646 = vsel %vm644, %v645, %v636
    %v647 = vshrl.u32 %v646, 7
    %v648 = vand.u32 %v646, 127
    %v649 = vsub.s32 0, %v648
    %v650 = vsel %vm644, %v649, %v648
    %vm651 = vcmp.ne.s32.totalorder %v643, 0
    %vm652 = vcmp.ne.s32.totalorder %v650, 0
    %vm653 = vcmp.lt.s32.totalorder %v643, 0
    %vm654 = vcmp.lt.s32.totalorder %v650, 0
    %vm655 = vmand %vm653, %vm651
    %vm656 = vmand %vm654, %vm652
    %v657 = vadd.s32 %v643, 128
    %v658 = vadd.s32 %v650, 128
    %v659 = vsel %vm655, %v657, %v643
    %v660 = vsel %vm656, %v658, %v650
    %vm661 = vcmp.lt.s32.totalorder %v659, 8
    %vm662 = vcmp.lt.s32.totalorder %v660, 8
    %v663 = vsel %vm661, %v632, 0.0
    %v664 = vsel %vm662, %v633, 0.0
    %665 = vst [vmem:[#allocation13] sm:$0xff] %v663
    %666 = vst [vmem:[#allocation13 + $0x8] sm:$0xff] %v664
    // Predicated region
    $region49: #{tpu_custom_call.1} parent=1 // pred_check
      %p667 = pneg %p76
    $region50: #{tpu_custom_call.1} parent=1 // pred_check_branch
      %669 = sbr.rel (%p667) target = $region52
    $region51: #{tpu_custom_call.1} parent=1 // pred_region
      loop: start=0, step=1, limit=8
      $region53: #{tpu_custom_call.1} parent=51 // loop_pre_header
        _
      $region54: #{tpu_custom_call.1} parent=51 // loop_header
        %s671 = sphi 0, %s675
        %p672 = scmp.ge.s32.totalorder %s671, 8
      $region55: #{tpu_custom_call.1} parent=51 // loop_header_branch
        %674 = sbr.rel (%p672) target = $region59
      $region56: #{tpu_custom_call.1} parent=51 // loop_body
        %s676 = sadd.s32 %s74, %s671
        %s677 = sld [smem:[#allocation5 + %s676]]
        %s678 = smul.u32 %s677, 8
        %s679 = sadd.s32 %s678, 128
        %s680 = smul.addr %s679, 16
        %s681 = scalar_lea.hbm %s7, %s680
        %s682 = smul.u32 %s671, 8
        %s683 = sadd.s32 %s682, 64
        %s684 = scalar_lea.vmem [#allocation2], %s683
        %s685 = scalar_lea.sflag [#allocation3], 1
        // Predicated region
        $region60: #{tpu_custom_call.1} parent=56 // pred_check
          _
        $region61: #{tpu_custom_call.1} parent=56 // pred_check_branch
          %687 = sbr.rel target = $region63
        $region62: #{tpu_custom_call.1} parent=56 // pred_region
          %688 = sst [smem:[#allocation19]] [#allocation22]
          %689 = sst [smem:[#allocation20]] [#allocation21]
        $region63: #{tpu_custom_call.1} parent=56 // pred_fallthru
          _
        %691 = shalt.err (0)
        %s693 = sshll.u32 %s684, 4
        %s694 = int_to_ptr.vmem [resolvable:$true] %s693
        %696 = dma.hbm_to_vmem [thread:$0]  %s681, 128, %s694, %s685
      $region57: #{tpu_custom_call.1} parent=51 // loop_footer
        %s675 = sadd.s32 1, %s671
      $region58: #{tpu_custom_call.1} parent=51 // loop_footer_branch
        %670 = sbr.rel target = $region54
      $region59: #{tpu_custom_call.1} parent=51 // loop_exit
        _
      loop: start=0, step=1, limit=8
      $region64: #{tpu_custom_call.1} parent=51 // loop_pre_header
        _
      $region65: #{tpu_custom_call.1} parent=51 // loop_header
        %s698 = sphi 0, %s702
        %p699 = scmp.ge.s32.totalorder %s698, 8
      $region66: #{tpu_custom_call.1} parent=51 // loop_header_branch
        %701 = sbr.rel (%p699) target = $region70
      $region67: #{tpu_custom_call.1} parent=51 // loop_body
        %s703 = smul.u32 8, 1
        %s704 = sshll.u32 %s703, 4
        %705 = dma.done [#allocation3], %s704
      $region68: #{tpu_custom_call.1} parent=51 // loop_footer
        %s702 = sadd.s32 1, %s698
      $region69: #{tpu_custom_call.1} parent=51 // loop_footer_branch
        %697 = sbr.rel target = $region65
      $region70: #{tpu_custom_call.1} parent=51 // loop_exit
        _
      %v706 = vld [vmem:[#allocation2] sm:$0xff]
      %v707 = vld [vmem:[#allocation2 + $0x8] sm:$0xff]
      %v708 = vld [vmem:[#allocation2 + $0x10] sm:$0xff]
      %v709 = vld [vmem:[#allocation2 + $0x18] sm:$0xff]
      %v710 = vld [vmem:[#allocation2 + $0x20] sm:$0xff]
      %v711 = vld [vmem:[#allocation2 + $0x28] sm:$0xff]
      %v712 = vld [vmem:[#allocation2 + $0x30] sm:$0xff]
      %v713 = vld [vmem:[#allocation2 + $0x38] sm:$0xff]
      %v714 = vlaneseq
      %v715 = vshrl.u32 %v714, 7
      %v716 = vsub.s32 0, %v715
      %v717 = vrot.slane %v663, %v716
      %719 = vbcast.lane.b32.xlu0 %v717, 256
      %v720 = vpop.permute.xlu0 %719
      %v721 = vlaneseq
      %v722 = vshrl.u32 %v721, 7
      %v723 = vsub.s32 1, %v722
      %v724 = vrot.slane %v663, %v723
      %726 = vbcast.lane.b32.xlu0 %v724, 256
      %v727 = vpop.permute.xlu0 %726
      %v728 = vlaneseq
      %v729 = vshrl.u32 %v728, 7
      %v730 = vsub.s32 2, %v729
      %v731 = vrot.slane %v663, %v730
      %733 = vbcast.lane.b32.xlu0 %v731, 256
      %v734 = vpop.permute.xlu0 %733
      %v735 = vlaneseq
      %v736 = vshrl.u32 %v735, 7
      %v737 = vsub.s32 3, %v736
      %v738 = vrot.slane %v663, %v737
      %740 = vbcast.lane.b32.xlu0 %v738, 256
      %v741 = vpop.permute.xlu0 %740
      %v742 = vlaneseq
      %v743 = vshrl.u32 %v742, 7
      %v744 = vsub.s32 4, %v743
      %v745 = vrot.slane %v663, %v744
      %747 = vbcast.lane.b32.xlu0 %v745, 256
      %v748 = vpop.permute.xlu0 %747
      %v749 = vlaneseq
      %v750 = vshrl.u32 %v749, 7
      %v751 = vsub.s32 5, %v750
      %v752 = vrot.slane %v663, %v751
      %754 = vbcast.lane.b32.xlu0 %v752, 256
      %v755 = vpop.permute.xlu0 %754
      %v756 = vlaneseq
      %v757 = vshrl.u32 %v756, 7
      %v758 = vsub.s32 6, %v757
      %v759 = vrot.slane %v663, %v758
      %761 = vbcast.lane.b32.xlu0 %v759, 256
      %v762 = vpop.permute.xlu0 %761
      %v763 = vlaneseq
      %v764 = vshrl.u32 %v763, 7
      %v765 = vsub.s32 7, %v764
      %v766 = vrot.slane %v663, %v765
      %768 = vbcast.lane.b32.xlu0 %v766, 256
      %v769 = vpop.permute.xlu0 %768
      %v770 = vmul.f32 %v720, %v706
      %v771 = vmul.f32 %v727, %v707
      %v772 = vmul.f32 %v734, %v708
      %v773 = vmul.f32 %v741, %v709
      %v774 = vmul.f32 %v748, %v710
      %v775 = vmul.f32 %v755, %v711
      %v776 = vmul.f32 %v762, %v712
      %v777 = vmul.f32 %v769, %v713
      %v778 = vrot.slane %v770, 4
      %v779 = vadd.f32 %v770, %v778
      %v780 = vrot.slane %v779, 2
      %v781 = vadd.f32 %v779, %v780
      %v782 = vrot.slane %v781, 1
      %v783 = vadd.f32 %v781, %v782
      %v784 = vrot.slane %v771, 4
      %v785 = vadd.f32 %v771, %v784
      %v786 = vrot.slane %v785, 2
      %v787 = vadd.f32 %v785, %v786
      %v788 = vrot.slane %v787, 1
      %v789 = vadd.f32 %v787, %v788
      %v790 = vrot.slane %v772, 4
      %v791 = vadd.f32 %v772, %v790
      %v792 = vrot.slane %v791, 2
      %v793 = vadd.f32 %v791, %v792
      %v794 = vrot.slane %v793, 1
      %v795 = vadd.f32 %v793, %v794
      %v796 = vrot.slane %v773, 4
      %v797 = vadd.f32 %v773, %v796
      %v798 = vrot.slane %v797, 2
      %v799 = vadd.f32 %v797, %v798
      %v800 = vrot.slane %v799, 1
      %v801 = vadd.f32 %v799, %v800
      %v802 = vrot.slane %v774, 4
      %v803 = vadd.f32 %v774, %v802
      %v804 = vrot.slane %v803, 2
      %v805 = vadd.f32 %v803, %v804
      %v806 = vrot.slane %v805, 1
      %v807 = vadd.f32 %v805, %v806
      %v808 = vrot.slane %v775, 4
      %v809 = vadd.f32 %v775, %v808
      %v810 = vrot.slane %v809, 2
      %v811 = vadd.f32 %v809, %v810
      %v812 = vrot.slane %v811, 1
      %v813 = vadd.f32 %v811, %v812
      %v814 = vrot.slane %v776, 4
      %v815 = vadd.f32 %v776, %v814
      %v816 = vrot.slane %v815, 2
      %v817 = vadd.f32 %v815, %v816
      %v818 = vrot.slane %v817, 1
      %v819 = vadd.f32 %v817, %v818
      %v820 = vrot.slane %v777, 4
      %v821 = vadd.f32 %v777, %v820
      %v822 = vrot.slane %v821, 2
      %v823 = vadd.f32 %v821, %v822
      %v824 = vrot.slane %v823, 1
      %v825 = vadd.f32 %v823, %v824
      %vm834 = vcmask 1041409
      %v835 = vsel %vm834, %v789, %v783
      %vm836 = vcmask 1042434
      %v837 = vsel %vm836, %v795, %v835
      %vm838 = vcmask 1043459
      %v839 = vsel %vm838, %v801, %v837
      %vm840 = vcmask 1044484
      %v841 = vsel %vm840, %v807, %v839
      %vm842 = vcmask 1045509
      %v843 = vsel %vm842, %v813, %v841
      %vm844 = vcmask 1046534
      %v845 = vsel %vm844, %v819, %v843
      %vm846 = vcmask 1047559
      %v847 = vsel %vm846, %v825, %v845
      %849 = vst [vmem:[#allocation14] sm:$0xff] %v847
    $region52: #{tpu_custom_call.1} parent=1 // pred_fallthru
      _
    %p850 = scmp.eq.s32.totalorder %s75, 0
    // Predicated region
    $region71: #{tpu_custom_call.1} parent=1 // pred_check
      %p851 = pneg %p850
    $region72: #{tpu_custom_call.1} parent=1 // pred_check_branch
      %853 = sbr.rel (%p851) target = $region74
    $region73: #{tpu_custom_call.1} parent=1 // pred_region
      %854 = vst [vmem:[#allocation14] sm:$0xff] %v663
    $region74: #{tpu_custom_call.1} parent=1 // pred_fallthru
      _
    %v855 = vld [vmem:[#allocation14] sm:$0xff]
    // Predicated region
    $region75: #{tpu_custom_call.1} parent=1 // pred_check
      %p856 = pneg %p76
    $region76: #{tpu_custom_call.1} parent=1 // pred_check_branch
      %858 = sbr.rel (%p856) target = $region78
    $region77: #{tpu_custom_call.1} parent=1 // pred_region
      loop: start=0, step=1, limit=8
      $region79: #{tpu_custom_call.1} parent=77 // loop_pre_header
        _
      $region80: #{tpu_custom_call.1} parent=77 // loop_header
        %s860 = sphi 0, %s864
        %p861 = scmp.ge.s32.totalorder %s860, 8
      $region81: #{tpu_custom_call.1} parent=77 // loop_header_branch
        %863 = sbr.rel (%p861) target = $region85
      $region82: #{tpu_custom_call.1} parent=77 // loop_body
        %s865 = scalar_lea.sflag [#allocation3], 1
        %s866 = smul.u32 8, 1
        %s867 = sshll.u32 %s866, 4
        %868 = dma.done %s865, %s867
      $region83: #{tpu_custom_call.1} parent=77 // loop_footer
        %s864 = sadd.s32 1, %s860
      $region84: #{tpu_custom_call.1} parent=77 // loop_footer_branch
        %859 = sbr.rel target = $region80
      $region85: #{tpu_custom_call.1} parent=77 // loop_exit
        _
      %s869 = scalar_lea.vmem [#allocation2], 64
      %v870 = vld [vmem:[%s869] sm:$0xff]
      %v871 = vld [vmem:[%s869 + $0x8] sm:$0xff]
      %v872 = vld [vmem:[%s869 + $0x10] sm:$0xff]
      %v873 = vld [vmem:[%s869 + $0x18] sm:$0xff]
      %v874 = vld [vmem:[%s869 + $0x20] sm:$0xff]
      %v875 = vld [vmem:[%s869 + $0x28] sm:$0xff]
      %v876 = vld [vmem:[%s869 + $0x30] sm:$0xff]
      %v877 = vld [vmem:[%s869 + $0x38] sm:$0xff]
      %v878 = vlaneseq
      %v879 = vshrl.u32 %v878, 7
      %v880 = vsub.s32 0, %v879
      %v881 = vrot.slane %v664, %v880
      %883 = vbcast.lane.b32.xlu0 %v881, 256
      %v884 = vpop.permute.xlu0 %883
      %v885 = vlaneseq
      %v886 = vshrl.u32 %v885, 7
      %v887 = vsub.s32 1, %v886
      %v888 = vrot.slane %v664, %v887
      %890 = vbcast.lane.b32.xlu0 %v888, 256
      %v891 = vpop.permute.xlu0 %890
      %v892 = vlaneseq
      %v893 = vshrl.u32 %v892, 7
      %v894 = vsub.s32 2, %v893
      %v895 = vrot.slane %v664, %v894
      %897 = vbcast.lane.b32.xlu0 %v895, 256
      %v898 = vpop.permute.xlu0 %897
      %v899 = vlaneseq
      %v900 = vshrl.u32 %v899, 7
      %v901 = vsub.s32 3, %v900
      %v902 = vrot.slane %v664, %v901
      %904 = vbcast.lane.b32.xlu0 %v902, 256
      %v905 = vpop.permute.xlu0 %904
      %v906 = vlaneseq
      %v907 = vshrl.u32 %v906, 7
      %v908 = vsub.s32 4, %v907
      %v909 = vrot.slane %v664, %v908
      %911 = vbcast.lane.b32.xlu0 %v909, 256
      %v912 = vpop.permute.xlu0 %911
      %v913 = vlaneseq
      %v914 = vshrl.u32 %v913, 7
      %v915 = vsub.s32 5, %v914
      %v916 = vrot.slane %v664, %v915
      %918 = vbcast.lane.b32.xlu0 %v916, 256
      %v919 = vpop.permute.xlu0 %918
      %v920 = vlaneseq
      %v921 = vshrl.u32 %v920, 7
      %v922 = vsub.s32 6, %v921
      %v923 = vrot.slane %v664, %v922
      %925 = vbcast.lane.b32.xlu0 %v923, 256
      %v926 = vpop.permute.xlu0 %925
      %v927 = vlaneseq
      %v928 = vshrl.u32 %v927, 7
      %v929 = vsub.s32 7, %v928
      %v930 = vrot.slane %v664, %v929
      %932 = vbcast.lane.b32.xlu0 %v930, 256
      %v933 = vpop.permute.xlu0 %932
      %v934 = vmul.f32 %v884, %v870
      %v935 = vmul.f32 %v891, %v871
      %v936 = vmul.f32 %v898, %v872
      %v937 = vmul.f32 %v905, %v873
      %v938 = vmul.f32 %v912, %v874
      %v939 = vmul.f32 %v919, %v875
      %v940 = vmul.f32 %v926, %v876
      %v941 = vmul.f32 %v933, %v877
      %v942 = vrot.slane %v934, 4
      %v943 = vadd.f32 %v934, %v942
      %v944 = vrot.slane %v943, 2
      %v945 = vadd.f32 %v943, %v944
      %v946 = vrot.slane %v945, 1
      %v947 = vadd.f32 %v945, %v946
      %v948 = vrot.slane %v935, 4
      %v949 = vadd.f32 %v935, %v948
      %v950 = vrot.slane %v949, 2
      %v951 = vadd.f32 %v949, %v950
      %v952 = vrot.slane %v951, 1
      %v953 = vadd.f32 %v951, %v952
      %v954 = vrot.slane %v936, 4
      %v955 = vadd.f32 %v936, %v954
      %v956 = vrot.slane %v955, 2
      %v957 = vadd.f32 %v955, %v956
      %v958 = vrot.slane %v957, 1
      %v959 = vadd.f32 %v957, %v958
      %v960 = vrot.slane %v937, 4
      %v961 = vadd.f32 %v937, %v960
      %v962 = vrot.slane %v961, 2
      %v963 = vadd.f32 %v961, %v962
      %v964 = vrot.slane %v963, 1
      %v965 = vadd.f32 %v963, %v964
      %v966 = vrot.slane %v938, 4
      %v967 = vadd.f32 %v938, %v966
      %v968 = vrot.slane %v967, 2
      %v969 = vadd.f32 %v967, %v968
      %v970 = vrot.slane %v969, 1
      %v971 = vadd.f32 %v969, %v970
      %v972 = vrot.slane %v939, 4
      %v973 = vadd.f32 %v939, %v972
      %v974 = vrot.slane %v973, 2
      %v975 = vadd.f32 %v973, %v974
      %v976 = vrot.slane %v975, 1
      %v977 = vadd.f32 %v975, %v976
      %v978 = vrot.slane %v940, 4
      %v979 = vadd.f32 %v940, %v978
      %v980 = vrot.slane %v979, 2
      %v981 = vadd.f32 %v979, %v980
      %v982 = vrot.slane %v981, 1
      %v983 = vadd.f32 %v981, %v982
      %v984 = vrot.slane %v941, 4
      %v985 = vadd.f32 %v941, %v984
      %v986 = vrot.slane %v985, 2
      %v987 = vadd.f32 %v985, %v986
      %v988 = vrot.slane %v987, 1
      %v989 = vadd.f32 %v987, %v988
      %vm998 = vcmask 1041409
      %v999 = vsel %vm998, %v953, %v947
      %vm1000 = vcmask 1042434
      %v1001 = vsel %vm1000, %v959, %v999
      %vm1002 = vcmask 1043459
      %v1003 = vsel %vm1002, %v965, %v1001
      %vm1004 = vcmask 1044484
      %v1005 = vsel %vm1004, %v971, %v1003
      %vm1006 = vcmask 1045509
      %v1007 = vsel %vm1006, %v977, %v1005
      %vm1008 = vcmask 1046534
      %v1009 = vsel %vm1008, %v983, %v1007
      %vm1010 = vcmask 1047559
      %v1011 = vsel %vm1010, %v989, %v1009
      %1013 = vst [vmem:[#allocation14 + $0x8] sm:$0xff] %v1011
    $region78: #{tpu_custom_call.1} parent=1 // pred_fallthru
      _
    // Predicated region
    $region86: #{tpu_custom_call.1} parent=1 // pred_check
      %p1014 = pneg %p850
    $region87: #{tpu_custom_call.1} parent=1 // pred_check_branch
      %1016 = sbr.rel (%p1014) target = $region89
    $region88: #{tpu_custom_call.1} parent=1 // pred_region
      %1017 = vst [vmem:[#allocation14 + $0x8] sm:$0xff] %v664
    $region89: #{tpu_custom_call.1} parent=1 // pred_fallthru
      _
    %v1018 = vld [vmem:[#allocation14 + $0x8] sm:$0xff]
    %1019 = vadd.xlane.f32.xlu0 %v855
    %v1020 = vpop.xlane.xlu0 %1019
    %v1021 = vadd.f32 %v1020, 8.0
    %1022 = vadd.xlane.f32.xlu0 %v1018
    %v1023 = vpop.xlane.xlu0 %1022
    %v1024 = vadd.f32 %v1023, 8.0
    %v1025 = vrcp.pop %v1021
    %v1026 = vrcp.pop %v1024
    %v1027 = vmul.f32 %v855, %v1025
    %v1028 = vmul.f32 %v1018, %v1026
    %v1029 = vmul.f32 %v1025, 8.0
    %v1030 = vmul.f32 %v1026, 8.0
    %1031 = vadd.xlane.f32.xlu0 %v1027
    %v1032 = vpop.xlane.xlu0 %1031
    %1033 = vadd.xlane.f32.xlu0 %v1028
    %v1034 = vpop.xlane.xlu0 %1033
    %v1035 = vmul.f32 %v1032, %v1034
    %v1036 = vmul.f32 %v1027, %v1028
    %1037 = vadd.xlane.f32.xlu0 %v1036
    %v1038 = vpop.xlane.xlu0 %1037
    %v1039 = vsub.f32 %v1035, %v1038
    %v1040 = vsub.f32 1.0, %v1039
    %v1041 = vrcp.pop %v1040
    %v1042 = vmul.f32 %v1027, %v1030
    %v1043 = vadd.f32 %v1036, %v1042
    %v1044 = vmul.f32 %v1028, %v1029
    %v1045 = vadd.f32 %v1043, %v1044
    %v1046 = vmul.f32 %v1045, %v1041
    %v1047 = vmul.f32 %v1029, %v1030
    %v1048 = vmul.f32 %v1047, %v1041
    %v1049 = vrcp.pop %v1048
    %v1050 = vmul.f32 %v1049, 8.0
    %v1051 = vmul.f32 %v1046, %v1050
    %1052 = vst [vmem:[#allocation16] sm:$0xff] %v1051
    // Predicated region
    $region90: #{tpu_custom_call.1} parent=1 // pred_check
      _
    $region91: #{tpu_custom_call.1} parent=1 // pred_check_branch
      %1054 = sbr.rel (0) target = $region93
    $region92: #{tpu_custom_call.1} parent=1 // pred_region
      %s1056 = ssub.s32 256, 256
      %1057 = vsyncadd [#allocation9], %s1056
      %s1059 = sshll.u32 [#allocation13], 4
      %s1060 = int_to_ptr.vmem [resolvable:$true] %s1059
      %1062 = dma.vmem_to_hbm [thread:$0]  %s1060, 256, %s8, [#allocation9]
    $region93: #{tpu_custom_call.1} parent=1 // pred_fallthru
      _
    // Predicated region
    $region94: #{tpu_custom_call.1} parent=1 // pred_check
      _
    $region95: #{tpu_custom_call.1} parent=1 // pred_check_branch
      %1064 = sbr.rel (0) target = $region97
    $region96: #{tpu_custom_call.1} parent=1 // pred_region
      %s1066 = ssub.s32 256, 256
      %1067 = vsyncadd [#allocation15], %s1066
      %s1069 = sshll.u32 [#allocation14], 4
      %s1070 = int_to_ptr.vmem [resolvable:$true] %s1069
      %1072 = dma.vmem_to_hbm [thread:$0]  %s1070, 256, %s9, [#allocation15]
    $region97: #{tpu_custom_call.1} parent=1 // pred_fallthru
      _
    // Predicated region
    $region98: #{tpu_custom_call.1} parent=1 // pred_check
      _
    $region99: #{tpu_custom_call.1} parent=1 // pred_check_branch
      %1074 = sbr.rel (0) target = $region101
    $region100: #{tpu_custom_call.1} parent=1 // pred_region
      %s1076 = ssub.s32 128, 128
      %1077 = vsyncadd [#allocation15], %s1076
      %s1079 = sshll.u32 [#allocation16], 4
      %s1080 = int_to_ptr.vmem [resolvable:$true] %s1079
      %1082 = dma.vmem_to_hbm [thread:$0]  %s1080, 128, %s10, [#allocation15]
    $region101: #{tpu_custom_call.1} parent=1 // pred_fallthru
      _
    // Predicated region
    $region102: #{tpu_custom_call.1} parent=1 // pred_check
      _
    $region103: #{tpu_custom_call.1} parent=1 // pred_check_branch
      %1084 = sbr.rel (0) target = $region105
    $region104: #{tpu_custom_call.1} parent=1 // pred_region
      %1085 = dma.done [#allocation9], 256
    $region105: #{tpu_custom_call.1} parent=1 // pred_fallthru
      _
    // Predicated region
    $region106: #{tpu_custom_call.1} parent=1 // pred_check
      _
    $region107: #{tpu_custom_call.1} parent=1 // pred_check_branch
      %1087 = sbr.rel (0) target = $region109
    $region108: #{tpu_custom_call.1} parent=1 // pred_region
      %1088 = dma.done [#allocation15], 256
    $region109: #{tpu_custom_call.1} parent=1 // pred_fallthru
      _
    // Predicated region
    $region110: #{tpu_custom_call.1} parent=1 // pred_check
      _
    $region111: #{tpu_custom_call.1} parent=1 // pred_check_branch
      %1090 = sbr.rel (0) target = $region113
    $region112: #{tpu_custom_call.1} parent=1 // pred_region
      %1091 = dma.done [#allocation15], 128
    $region113: #{tpu_custom_call.1} parent=1 // pred_fallthru
      _
    %1092 = vsyncpa [#allocation8], 1
    %1093 = vsyncpa [#allocation11], 1
    %1094 = vsyncpa [#allocation9], 1
    %1095 = vsyncpa [#allocation15], 1
  %1096 = vsyncmov [#allocation3]
  %s1097 = vpop.sfrf %1096
  %p1098 = scmp.eq.s32.totalorder %s1097, 0
  %p1099 = pneg %p1098
  %1101 = shalt.err (%p1099)
  %s1102 = scalar_lea.sflag [#allocation3], 1
  %1103 = vsyncmov %s1102
  %s1104 = vpop.sfrf %1103
  %p1105 = scmp.eq.s32.totalorder %s1104, 0
  %p1106 = pneg %p1105
  %1108 = shalt.err (%p1106)

</llo_original>
